<compile_context>
chip_gen: v6e
topology: v6e:2x2x1
jax: 0.10.0
libtpu: 0.0.40
codegen_flags: <defaults>
</compile_context>

<pallas_src>
import jax
import jax.numpy as jnp
from jax import lax
from jax.experimental import pallas as pl
from jax.experimental.pallas import tpu as pltpu


# ----------------------------- fused kernel ----------------------------------

def _make_fused_kernel(L):
    """L = Ck * H (number of attention 'tokens')."""

    def kernel(x_ref, wqkv_ref, wl_ref, gamma_ref, o_ref):
        # x_ref / o_ref : (1, C*H, W) f32 token-major slabs
        # wqkv_ref      : (3*L, C_in*H) bf16  (stacked, Kronecker-expanded)
        # wl_ref        : (C_out*H, L)  bf16  (Kronecker-expanded)
        # gamma_ref     : (1,) f32 scalar in SMEM
        x_lw = x_ref[0]                                   # (C_in*H, W) f32
        x_bf = x_lw.astype(jnp.bfloat16)

        # --- fused q/k/v projection: one MXU matmul ---
        qkv = jnp.dot(wqkv_ref[...], x_bf,
                      preferred_element_type=jnp.float32)  # (3L, W) f32
        q = qkv[0 * L:1 * L].astype(jnp.bfloat16)          # (L, W)
        k = qkv[1 * L:2 * L].astype(jnp.bfloat16)          # (L, W)
        v = qkv[2 * L:3 * L].astype(jnp.bfloat16)          # (L, W)

        # --- softmax attention over the (channel, row) token axis ---
        s = lax.dot_general(q, k, (((1,), (1,)), ((), ())),
                            preferred_element_type=jnp.float32)      # (L, L)
        s = s - jnp.max(s, axis=-1, keepdims=True)                   # stable
        e = jnp.exp(s)
        inv = pl.reciprocal(jnp.sum(e, axis=-1, keepdims=True), approx=True)
        beta = e * inv
        attn = jnp.dot(beta.astype(jnp.bfloat16), v,
                       preferred_element_type=jnp.float32)           # (L, W)

        # --- last 1x1 conv (Kronecker-expanded) + gamma scale + residual ---
        y = jnp.dot(wl_ref[...], attn.astype(jnp.bfloat16),
                    preferred_element_type=jnp.float32)   # (C_out*H, W) f32
        o_ref[0] = gamma_ref[0] * y + x_lw

    return kernel


# ----------------------------- wrapper ----------------------------------------

def attention_forward(x, wq, wk, wv, wl, gamma):
    """Pallas implementation of Attention.forward. x: [B, C_in, H, W] (NCHW)."""
    B, C_in, H, W = x.shape
    Ck = wq.shape[0]
    Cv = wv.shape[0]
    C_out = wl.shape[0]
    assert C_out == C_in, "residual `out + x` requires output_channels == input_channels"
    assert Ck == Cv, "torch einsum requires matching 'L' dims (ratio_kq == ratio_v)"
    assert wk.shape[0] == Ck

    L = Ck * H          # attention tokens = (channel, row) pairs
    CH = C_in * H
    OH = C_out * H

    # Kronecker-expand the 1x1-conv weights with I_H so every matmul operates
    # directly in the (c*H, W) token layout -> no in-kernel relayouts.
    eye_h = jnp.eye(H, dtype=jnp.float32)
    wqkv = jnp.concatenate([wq, wk, wv], axis=0)                   # (3*Ck, C_in)
    wqkv_kron = jnp.kron(wqkv, eye_h).astype(jnp.bfloat16)         # (3*L, C_in*H)
    wl_kron = jnp.kron(wl, eye_h).astype(jnp.bfloat16)             # (C_out*H, L)

    x_lw = x.reshape(B, CH, W)      # free row-major view in HBM

    kernel = _make_fused_kernel(L)

    out_lw = pl.pallas_call(
        kernel,
        out_shape=jax.ShapeDtypeStruct((B, OH, W), jnp.float32),
        grid=(B,),
        in_specs=[
            pl.BlockSpec((1, CH, W), lambda b: (b, 0, 0)),   # x (per batch)
            pl.BlockSpec((3 * L, CH), lambda b: (0, 0)),     # qkv weight (resident)
            pl.BlockSpec((OH, L), lambda b: (0, 0)),         # last-conv weight (resident)
            pl.BlockSpec(memory_space=pltpu.MemorySpace.SMEM),  # gamma scalar
        ],
        out_specs=pl.BlockSpec((1, OH, W), lambda b: (b, 0, 0)),
        compiler_params=pltpu.CompilerParams(dimension_semantics=("parallel",)),
    )(x_lw, wqkv_kron, wl_kron, gamma)

    return out_lw.reshape(B, C_out, H, W)   # free view back to NCHW


# ----------------------------- reference (pure JAX, f32) -----------------------

def attention_reference(x, wq, wk, wv, wl, gamma):
    B, C, H, W = x.shape
    Ck = wq.shape[0]
    Cv = wv.shape[0]
    q = jnp.einsum('oc,bchw->bohw', wq, x)
    k = jnp.einsum('oc,bchw->bohw', wk, x)
    v = jnp.einsum('oc,bchw->bohw', wv, x)
    qf = q.reshape(B, Ck * H, W)
    kf = k.reshape(B, Ck * H, W)
    vf = v.reshape(B, Cv * H, W)
    s = jnp.einsum('blw,bmw->blm', qf, kf)
    beta = jax.nn.softmax(s, axis=-1)
    attn = jnp.einsum('blm,bmw->blw', beta, vf).reshape(B, Ck, H, W)
    out = gamma[0] * jnp.einsum('oc,bchw->bohw', wl, attn)
    return out + x


# ----------------------------- main -------------------------------------------

if __name__ == "__main__":
    B, C_in, H, W = 2, 32, 16, 16
    C_out = 32
    ratio_kq = ratio_v = 8
    Ck = C_out // ratio_kq
    Cv = C_out // ratio_v

    key = jax.random.PRNGKey(0)
    kx, kq, kk, kv, kl = jax.random.split(key, 5)
    x = jax.random.normal(kx, (B, C_in, H, W), dtype=jnp.float32)
    # Conv2d(k=1) weights are (out, in, 1, 1) in PyTorch; stored here as (out, in).
    wq = 0.1 * jax.random.normal(kq, (Ck, C_in), dtype=jnp.float32)
    wk = 0.1 * jax.random.normal(kk, (Ck, C_in), dtype=jnp.float32)
    wv = 0.1 * jax.random.normal(kv, (Cv, C_in), dtype=jnp.float32)
    wl = 0.1 * jax.random.normal(kl, (C_out, Ck), dtype=jnp.float32)
    # PyTorch initializes gamma to 0 (making the block an identity); use a
    # deterministic nonzero value so the attention path is actually exercised.
    gamma = jnp.array([0.5], dtype=jnp.float32)

    out = attention_forward(x, wq, wk, wv, wl, gamma)
    out = jax.block_until_ready(out)

    ref = attention_reference(x, wq, wk, wv, wl, gamma)
    assert out.shape == (B, C_out, H, W), out.shape
    if not jnp.allclose(out, ref, atol=3e-2, rtol=3e-2):
        max_err = jnp.max(jnp.abs(out - ref))
        raise AssertionError(f"Pallas output does not match reference (max err {max_err})")

    print("KERNEL_OK")
</pallas_src>

<mosaic_0001>
module attributes {stable_mosaic.version = 11 : i64} {
  func.func @kernel(%arg0: i32, %arg1: memref<1x512x16xf32, #tpu.memory_space<vmem>>, %arg2: memref<192x512xbf16, #tpu.memory_space<vmem>>, %arg3: memref<512x64xbf16, #tpu.memory_space<vmem>>, %arg4: memref<1xf32, #tpu.memory_space<smem>>, %arg5: memref<1x512x16xf32, #tpu.memory_space<vmem>>) attributes {dimension_semantics = [#tpu.dimension_semantics<parallel>], iteration_bounds = array<i64: 2>, scalar_prefetch = 0 : i64, scratch_operands = 0 : i64, tpu.core_type = #tpu.core_type<tc>, window_params = [{transform_indices = @transform_0, window_bounds = array<i64: 1, 512, 16>}, {pipeline_mode = #tpu.pipeline_mode<synchronous>, transform_indices = @transform_1, window_bounds = array<i64: 192, 512>}, {pipeline_mode = #tpu.pipeline_mode<synchronous>, transform_indices = @transform_2, window_bounds = array<i64: 512, 64>}, {transform_indices = @transform_3, window_bounds = array<i64: 1>}, {transform_indices = @transform_4, window_bounds = array<i64: 1, 512, 16>}]} {
    %c0 = arith.constant 0 : index
    %c0_0 = arith.constant 0 : index
    %c0_1 = arith.constant 0 : index
    %0 = vector.load %arg1[%c0, %c0_0, %c0_1] : memref<1x512x16xf32, #tpu.memory_space<vmem>>, vector<1x512x16xf32>
    %1 = vector.shape_cast %0 : vector<1x512x16xf32> to vector<512x16xf32>
    %2 = arith.truncf %1 : vector<512x16xf32> to vector<512x16xbf16>
    %c0_2 = arith.constant 0 : index
    %c0_3 = arith.constant 0 : index
    %3 = vector.load %arg2[%c0_2, %c0_3] : memref<192x512xbf16, #tpu.memory_space<vmem>>, vector<192x512xbf16>
    %cst = arith.constant dense<0.000000e+00> : vector<192x16xf32>
    %4 = tpu.matmul %3, %2, %cst {dimension_numbers = #tpu.dot_dimension_numbers<[1], [0], [0], [1], [0, 0, 1, 1], [], []>} : vector<192x512xbf16>, vector<512x16xbf16>, vector<192x16xf32> -> vector<192x16xf32>
    %5 = vector.extract_strided_slice %4 {offsets = [0, 0], sizes = [64, 16], strides = [1, 1]} : vector<192x16xf32> to vector<64x16xf32>
    %6 = arith.truncf %5 : vector<64x16xf32> to vector<64x16xbf16>
    %7 = vector.extract_strided_slice %4 {offsets = [64, 0], sizes = [64, 16], strides = [1, 1]} : vector<192x16xf32> to vector<64x16xf32>
    %8 = arith.truncf %7 : vector<64x16xf32> to vector<64x16xbf16>
    %9 = vector.extract_strided_slice %4 {offsets = [128, 0], sizes = [64, 16], strides = [1, 1]} : vector<192x16xf32> to vector<64x16xf32>
    %10 = arith.truncf %9 : vector<64x16xf32> to vector<64x16xbf16>
    %cst_4 = arith.constant dense<0.000000e+00> : vector<64x64xf32>
    %11 = tpu.matmul %6, %8, %cst_4 {dimension_numbers = #tpu.dot_dimension_numbers<[1], [1], [0], [0], [0, 0, 1, 0], [], []>} : vector<64x16xbf16>, vector<64x16xbf16>, vector<64x64xf32> -> vector<64x64xf32>
    %cst_5 = arith.constant dense<0xFF800000> : vector<64xf32>
    %12 = vector.multi_reduction <maximumf>, %11, %cst_5 [1] : vector<64x64xf32> to vector<64xf32>
    %13 = vector.shape_cast %12 : vector<64xf32> to vector<64x1xf32>
    %14 = vector.broadcast %13 : vector<64x1xf32> to vector<64x64xf32>
    %15 = arith.subf %11, %14 : vector<64x64xf32>
    %16 = math.exp %15 : vector<64x64xf32>
    %cst_6 = arith.constant dense<0.000000e+00> : vector<64xf32>
    %17 = vector.multi_reduction <add>, %16, %cst_6 [1] : vector<64x64xf32> to vector<64xf32>
    %18 = vector.shape_cast %17 : vector<64xf32> to vector<64x1xf32>
    %19 = tpu.reciprocal %18 {approx = true} : vector<64x1xf32> -> vector<64x1xf32>
    %20 = vector.broadcast %19 : vector<64x1xf32> to vector<64x64xf32>
    %21 = arith.mulf %16, %20 : vector<64x64xf32>
    %22 = arith.truncf %21 : vector<64x64xf32> to vector<64x64xbf16>
    %cst_7 = arith.constant dense<0.000000e+00> : vector<64x16xf32>
    %23 = tpu.matmul %22, %10, %cst_7 {dimension_numbers = #tpu.dot_dimension_numbers<[1], [0], [0], [1], [0, 0, 1, 1], [], []>} : vector<64x64xbf16>, vector<64x16xbf16>, vector<64x16xf32> -> vector<64x16xf32>
    %c0_8 = arith.constant 0 : index
    %c0_9 = arith.constant 0 : index
    %24 = vector.load %arg3[%c0_8, %c0_9] : memref<512x64xbf16, #tpu.memory_space<vmem>>, vector<512x64xbf16>
    %25 = arith.truncf %23 : vector<64x16xf32> to vector<64x16xbf16>
    %cst_10 = arith.constant dense<0.000000e+00> : vector<512x16xf32>
    %26 = tpu.matmul %24, %25, %cst_10 {dimension_numbers = #tpu.dot_dimension_numbers<[1], [0], [0], [1], [0, 0, 1, 1], [], []>} : vector<512x64xbf16>, vector<64x16xbf16>, vector<512x16xf32> -> vector<512x16xf32>
    %c0_11 = arith.constant 0 : index
    %27 = memref.load %arg4[%c0_11] : memref<1xf32, #tpu.memory_space<smem>>
    %28 = vector.broadcast %27 : f32 to vector<512x16xf32>
    %29 = arith.mulf %28, %26 : vector<512x16xf32>
    %30 = arith.addf %29, %1 : vector<512x16xf32>
    %c0_12 = arith.constant 0 : index
    %c0_13 = arith.constant 0 : index
    %c0_14 = arith.constant 0 : index
    %31 = vector.load %arg5[%c0_12, %c0_13, %c0_14] : memref<1x512x16xf32, #tpu.memory_space<vmem>>, vector<1x512x16xf32>
    %32 = vector.shape_cast %31 : vector<1x512x16xf32> to vector<512x16xf32>
    %33 = vector.shape_cast %30 : vector<512x16xf32> to vector<1x512x16xf32>
    tpu.vector_store %arg5[%c0_12, %c0_13, %c0_14], %33 {strides = array<i32>} : memref<1x512x16xf32, #tpu.memory_space<vmem>>, vector<1x512x16xf32>,
    return
  }
  func.func @transform_0(%arg0: i32) -> (i32, i32, i32) {
    %c0_i32 = arith.constant 0 : i32
    %c0_i32_0 = arith.constant 0 : i32
    %c0_i32_1 = arith.constant 0 : i32
    return %arg0, %c0_i32, %c0_i32_0 : i32, i32, i32
  }
  func.func @transform_1(%arg0: i32) -> (i32, i32) {
    %c0_i32 = arith.constant 0 : i32
    %c0_i32_0 = arith.constant 0 : i32
    %c0_i32_1 = arith.constant 0 : i32
    return %c0_i32, %c0_i32_0 : i32, i32
  }
  func.func @transform_2(%arg0: i32) -> (i32, i32) {
    %c0_i32 = arith.constant 0 : i32
    %c0_i32_0 = arith.constant 0 : i32
    %c0_i32_1 = arith.constant 0 : i32
    return %c0_i32, %c0_i32_0 : i32, i32
  }
  func.func @transform_3(%arg0: i32) -> i32 {
    %c0_i32 = arith.constant 0 : i32
    %c0_i32_0 = arith.constant 0 : i32
    return %c0_i32 : i32
  }
  func.func @transform_4(%arg0: i32) -> (i32, i32, i32) {
    %c0_i32 = arith.constant 0 : i32
    %c0_i32_0 = arith.constant 0 : i32
    %c0_i32_1 = arith.constant 0 : i32
    return %arg0, %c0_i32, %c0_i32_0 : i32, i32, i32
  }
}

</mosaic_0001>

<llo_original>
// kernel: tpu_custom_call.1
$region0: #{tpu_custom_call.1}
  #allocation0 [shape = 'u32[]', space=smem, size = 0x4, offset = 0x4, fixed_abs, tag = 'smem constant byte address 0x4 - core index']
  #allocation1 [shape = 'u32[144,128]{1,0:T(1,128)}', space=vmem, size = 0x12000, scoped, tag = 'internal scratch']
  #allocation2 [shape = 'f32[1]{0:T(128)S(6)}', space=smem, size = 0x200, scoped, tag = 'scoped memory for tpu_custom_call.1']
  %s0 = inlined_call_operand.vmem [shape: f32[2,512,16], index: 0, kind: input, shape index: {}]
  %s1 = inlined_call_operand.vmem [shape: bf16[192,512], index: 1, kind: input, shape index: {}]
  %s2 = inlined_call_operand.vmem [shape: bf16[512,64], index: 2, kind: input, shape index: {}]
  %s3 = inlined_call_operand.<no memory space> [shape: f32[1], index: 3, kind: input, shape index: {}]
  %s4 = inlined_call_operand.vmem [shape: f32[2,512,16], index: 4, kind: output, shape index: {}]
  %s5 = sld [smem:[#allocation0]]
  $region49: #{tpu_custom_call.1} parent=0
    _
  %s7 = ssub.s32 1, %s5
  %s8 = scalar_select 0, %s7, %s5
  %9 = sst [smem:[#allocation2]] %s3
  loop: start=0, step=1, limit=4
  $region2: #{tpu_custom_call.1} parent=0 // loop_pre_header
    _
  $region3: #{tpu_custom_call.1} parent=0 // loop_header
    %s11 = sphi 0, %s15
    %p12 = scmp.ge.s32.totalorder %s11, 4
    %s21 = sphi 0, %s23
    %s24 = sphi 0, %s21
    %s25 = sphi 0, %s24
    %s41 = sphi 0, %s25
    %s45 = sphi 0, %s45
    %s47 = sphi 0, %s45
    %s48 = sphi 0, %s47
    %s62 = sphi 0, %s48
    %s66 = sphi 0, %s66
    %s68 = sphi 0, %s66
    %s69 = sphi 0, %s68
    %s83 = sphi 0, %s69
    %s87 = sphi 0, %s87
    %s89 = sphi 0, %s87
    %s90 = sphi 0, %s89
    %s104 = sphi 0, %s90
    %s110 = sphi 0, %s112
    %s113 = sphi 0, %s110
    %s114 = sphi 0, %s113
    %s130 = sphi 0, %s114
  $region4: #{tpu_custom_call.1} parent=0 // loop_header_branch
    %14 = sbr.rel (%p12) target = $region8
  $region5: #{tpu_custom_call.1} parent=0 // loop_body
    %s16 = ssub.s32 %s11, 1
    %s17 = ssub.s32 %s11, 2
    %s18 = sadd.s32 %s11, 1
    %s19 = ssub.s32 %s11, %s18
    %p20 = scmp.eq.s32.totalorder %s19, 0
    %s22 = sadd.s32 %s21, 1
    %s23 = scalar_select %p20, %s21, %s22
    %p26 = pneg %p20
    %p27 = scmp.eq.s32.totalorder %s11, 1
    %p28 = por %p26, %p27
    %p29 = scmp.ne.s32.totalorder %s21, %s24
    %p30 = scmp.eq.s32.totalorder %s11, 0
    %p31 = por %p29, %p30
    %p32 = scmp.ne.s32.totalorder %s21, %s24
    %p33 = scmp.eq.s32.totalorder %s16, 1
    %p34 = por %p32, %p33
    %p35 = scmp.ne.s32.totalorder %s24, %s25
    %p36 = scmp.eq.s32.totalorder %s16, 0
    %p37 = por %p35, %p36
    %p38 = scmp.ne.s32.totalorder %s24, %s25
    %p39 = scmp.eq.s32.totalorder %s17, 1
    %p40 = por %p38, %p39
    %p42 = scmp.ne.s32.totalorder %s25, %s41
    %p43 = scmp.eq.s32.totalorder %s17, 0
    %p44 = por %p42, %p43
    %s46 = sadd.s32 %s45, 1
    %p49 = scmp.eq.s32.totalorder %s11, 1
    %p50 = scmp.ne.s32.totalorder %s45, %s47
    %p51 = scmp.eq.s32.totalorder %s11, 0
    %p52 = por %p50, %p51
    %p53 = scmp.ne.s32.totalorder %s45, %s47
    %p54 = scmp.eq.s32.totalorder %s16, 1
    %p55 = por %p53, %p54
    %p56 = scmp.ne.s32.totalorder %s47, %s48
    %p57 = scmp.eq.s32.totalorder %s16, 0
    %p58 = por %p56, %p57
    %p59 = scmp.ne.s32.totalorder %s47, %s48
    %p60 = scmp.eq.s32.totalorder %s17, 1
    %p61 = por %p59, %p60
    %p63 = scmp.ne.s32.totalorder %s48, %s62
    %p64 = scmp.eq.s32.totalorder %s17, 0
    %p65 = por %p63, %p64
    %s67 = sadd.s32 %s66, 1
    %p70 = scmp.eq.s32.totalorder %s11, 1
    %p71 = scmp.ne.s32.totalorder %s66, %s68
    %p72 = scmp.eq.s32.totalorder %s11, 0
    %p73 = por %p71, %p72
    %p74 = scmp.ne.s32.totalorder %s66, %s68
    %p75 = scmp.eq.s32.totalorder %s16, 1
    %p76 = por %p74, %p75
    %p77 = scmp.ne.s32.totalorder %s68, %s69
    %p78 = scmp.eq.s32.totalorder %s16, 0
    %p79 = por %p77, %p78
    %p80 = scmp.ne.s32.totalorder %s68, %s69
    %p81 = scmp.eq.s32.totalorder %s17, 1
    %p82 = por %p80, %p81
    %p84 = scmp.ne.s32.totalorder %s69, %s83
    %p85 = scmp.eq.s32.totalorder %s17, 0
    %p86 = por %p84, %p85
    %s88 = sadd.s32 %s87, 1
    %p91 = scmp.eq.s32.totalorder %s11, 1
    %p92 = scmp.ne.s32.totalorder %s87, %s89
    %p93 = scmp.eq.s32.totalorder %s11, 0
    %p94 = por %p92, %p93
    %p95 = scmp.ne.s32.totalorder %s87, %s89
    %p96 = scmp.eq.s32.totalorder %s16, 1
    %p97 = por %p95, %p96
    %p98 = scmp.ne.s32.totalorder %s89, %s90
    %p99 = scmp.eq.s32.totalorder %s16, 0
    %p100 = por %p98, %p99
    %p101 = scmp.ne.s32.totalorder %s89, %s90
    %p102 = scmp.eq.s32.totalorder %s17, 1
    %p103 = por %p101, %p102
    %p105 = scmp.ne.s32.totalorder %s90, %s104
    %p106 = scmp.eq.s32.totalorder %s17, 0
    %p107 = por %p105, %p106
    %s108 = ssub.s32 %s11, %s18
    %p109 = scmp.eq.s32.totalorder %s108, 0
    %s111 = sadd.s32 %s110, 1
    %s112 = scalar_select %p109, %s110, %s111
    %p115 = pneg %p109
    %p116 = scmp.eq.s32.totalorder %s11, 1
    %p117 = por %p115, %p116
    %p118 = scmp.ne.s32.totalorder %s110, %s113
    %p119 = scmp.eq.s32.totalorder %s11, 0
    %p120 = por %p118, %p119
    %p121 = scmp.ne.s32.totalorder %s110, %s113
    %p122 = scmp.eq.s32.totalorder %s16, 1
    %p123 = por %p121, %p122
    %p124 = scmp.ne.s32.totalorder %s113, %s114
    %p125 = scmp.eq.s32.totalorder %s16, 0
    %p126 = por %p124, %p125
    %p127 = scmp.ne.s32.totalorder %s113, %s114
    %p128 = scmp.eq.s32.totalorder %s17, 1
    %p129 = por %p127, %p128
    %p131 = scmp.ne.s32.totalorder %s114, %s130
    %p132 = scmp.eq.s32.totalorder %s17, 0
    %p133 = por %p131, %p132
    %p134 = scmp.le.s32.totalorder 1, %s11
    %p135 = scmp.lt.s32.totalorder %s11, 3
    %p136 = pnand %p134, %p135
    %p137 = pneg %p136
    // Predicated region
    $region9: #{tpu_custom_call.1} parent=5 // pred_check
      _
    $region10: #{tpu_custom_call.1} parent=5 // pred_check_branch
      %139 = sbr.rel (%p136) target = $region12
    $region11: #{tpu_custom_call.1} parent=5 // pred_region
      %s140 = ssub.s32 %s11, 1
      // Predicated region
      $region13: #{tpu_custom_call.1} parent=11 // pred_check
        %p141 = pneg %p58
      $region14: #{tpu_custom_call.1} parent=11 // pred_check_branch
        %143 = sbr.rel (%p141) target = $region16
      $region15: #{tpu_custom_call.1} parent=11 // pred_region
        _
      $region16: #{tpu_custom_call.1} parent=11 // pred_fallthru
        _
      // Predicated region
      $region17: #{tpu_custom_call.1} parent=11 // pred_check
        %p144 = pneg %p79
      $region18: #{tpu_custom_call.1} parent=11 // pred_check_branch
        %146 = sbr.rel (%p144) target = $region20
      $region19: #{tpu_custom_call.1} parent=11 // pred_region
        _
      $region20: #{tpu_custom_call.1} parent=11 // pred_fallthru
        _
      // Predicated region
      $region21: #{tpu_custom_call.1} parent=11 // pred_check
        %p147 = pneg %p100
      $region22: #{tpu_custom_call.1} parent=11 // pred_check_branch
        %149 = sbr.rel (%p147) target = $region24
      $region23: #{tpu_custom_call.1} parent=11 // pred_region
        _
      $region24: #{tpu_custom_call.1} parent=11 // pred_fallthru
        _
    $region12: #{tpu_custom_call.1} parent=5 // pred_fallthru
      _
    %p150 = scmp.lt.s32.totalorder %s11, 2
    // Predicated region
    $region25: #{tpu_custom_call.1} parent=5 // pred_check
      %p151 = pneg %p150
    $region26: #{tpu_custom_call.1} parent=5 // pred_check_branch
      %153 = sbr.rel (%p151) target = $region28
    $region27: #{tpu_custom_call.1} parent=5 // pred_region
      // Predicated region
      $region29: #{tpu_custom_call.1} parent=27 // pred_check
        %p154 = pneg %p31
      $region30: #{tpu_custom_call.1} parent=27 // pred_check_branch
        %156 = sbr.rel (%p154) target = $region32
      $region31: #{tpu_custom_call.1} parent=27 // pred_region
        %p157 = scmp.lt.s32.totalorder %s11, 1
        %s158 = scalar_select %p157, %s11, 1
        %s159 = smul.addr %s158, 64
        %s160 = smul.addr %s159, 8
        %s161 = scalar_lea.vmem %s0, %s160
      $region32: #{tpu_custom_call.1} parent=27 // pred_fallthru
        _
    $region28: #{tpu_custom_call.1} parent=5 // pred_fallthru
      _
    %p162 = scmp.le.s32.totalorder 1, %s11
    %p163 = scmp.lt.s32.totalorder %s11, 3
    %p164 = pnand %p162, %p163
    %p165 = pneg %p164
    // Predicated region
    $region33: #{tpu_custom_call.1} parent=5 // pred_check
      _
    $region34: #{tpu_custom_call.1} parent=5 // pred_check_branch
      %167 = sbr.rel (%p164) target = $region36
    $region35: #{tpu_custom_call.1} parent=5 // pred_region
      %s168 = ssub.s32 %s11, 1
      %p169 = scmp.lt.s32.totalorder %s16, 1
      %s170 = scalar_select %p169, %s16, 1
      %s171 = smul.addr %s170, 64
      %s172 = smul.addr %s171, 8
      %s173 = scalar_lea.vmem %s0, %s172
      %p174 = pneg %p37
      %p175 = pneg %p34
      %p176 = pneg %p58
      %p177 = pneg %p55
      %p178 = pneg %p79
      %p179 = pneg %p76
      %p180 = pneg %p100
      %p181 = pneg %p97
      %p182 = pneg %p126
      %p183 = pneg %p123
      %p184 = scmp.lt.s32.totalorder %s16, 1
      %s185 = scalar_select %p184, %s16, 1
      %s186 = smul.addr %s185, 64
      %s187 = smul.addr %s186, 8
      %s188 = scalar_lea.vmem %s4, %s187
      %p189 = scmp.lt.s32.totalorder %s16, 1
      %s190 = scalar_select %p189, %s16, 1
      %s191 = smul.addr %s190, 64
      %s192 = smul.addr %s191, 8
      %s193 = scalar_lea.vmem %s0, %s192
      %p194 = scmp.lt.s32.totalorder %s16, 1
      %s195 = scalar_select %p194, %s16, 1
      %s196 = smul.addr %s195, 64
      %s197 = smul.addr %s196, 8
      %s198 = scalar_lea.vmem %s4, %s197
      %v200 = vld [vmem:[%s193] sm:$0xff]
      %v201 = vld [vmem:[%s193 + $0x8] sm:$0xff]
      %v202 = vld [vmem:[%s193 + $0x10] sm:$0xff]
      %v203 = vld [vmem:[%s193 + $0x18] sm:$0xff]
      %v204 = vld [vmem:[%s193 + $0x20] sm:$0xff]
      %v205 = vld [vmem:[%s193 + $0x28] sm:$0xff]
      %v206 = vld [vmem:[%s193 + $0x30] sm:$0xff]
      %v207 = vld [vmem:[%s193 + $0x38] sm:$0xff]
      %v208 = vld [vmem:[%s193 + $0x40] sm:$0xff]
      %v209 = vld [vmem:[%s193 + $0x48] sm:$0xff]
      %v210 = vld [vmem:[%s193 + $0x50] sm:$0xff]
      %v211 = vld [vmem:[%s193 + $0x58] sm:$0xff]
      %v212 = vld [vmem:[%s193 + $0x60] sm:$0xff]
      %v213 = vld [vmem:[%s193 + $0x68] sm:$0xff]
      %v214 = vld [vmem:[%s193 + $0x70] sm:$0xff]
      %v215 = vld [vmem:[%s193 + $0x78] sm:$0xff]
      %v216 = vld [vmem:[%s193 + $0x80] sm:$0xff]
      %v217 = vld [vmem:[%s193 + $0x88] sm:$0xff]
      %v218 = vld [vmem:[%s193 + $0x90] sm:$0xff]
      %v219 = vld [vmem:[%s193 + $0x98] sm:$0xff]
      %v220 = vld [vmem:[%s193 + $0xa0] sm:$0xff]
      %v221 = vld [vmem:[%s193 + $0xa8] sm:$0xff]
      %v222 = vld [vmem:[%s193 + $0xb0] sm:$0xff]
      %v223 = vld [vmem:[%s193 + $0xb8] sm:$0xff]
      %v224 = vld [vmem:[%s193 + $0xc0] sm:$0xff]
      %v225 = vld [vmem:[%s193 + $0xc8] sm:$0xff]
      %v226 = vld [vmem:[%s193 + $0xd0] sm:$0xff]
      %v227 = vld [vmem:[%s193 + $0xd8] sm:$0xff]
      %v228 = vld [vmem:[%s193 + $0xe0] sm:$0xff]
      %v229 = vld [vmem:[%s193 + $0xe8] sm:$0xff]
      %v230 = vld [vmem:[%s193 + $0xf0] sm:$0xff]
      %v231 = vld [vmem:[%s193 + $0xf8] sm:$0xff]
      %v232 = vld [vmem:[%s193 + $0x100] sm:$0xff]
      %v233 = vld [vmem:[%s193 + $0x108] sm:$0xff]
      %v234 = vld [vmem:[%s193 + $0x110] sm:$0xff]
      %v235 = vld [vmem:[%s193 + $0x118] sm:$0xff]
      %v236 = vld [vmem:[%s193 + $0x120] sm:$0xff]
      %v237 = vld [vmem:[%s193 + $0x128] sm:$0xff]
      %v238 = vld [vmem:[%s193 + $0x130] sm:$0xff]
      %v239 = vld [vmem:[%s193 + $0x138] sm:$0xff]
      %v240 = vld [vmem:[%s193 + $0x140] sm:$0xff]
      %v241 = vld [vmem:[%s193 + $0x148] sm:$0xff]
      %v242 = vld [vmem:[%s193 + $0x150] sm:$0xff]
      %v243 = vld [vmem:[%s193 + $0x158] sm:$0xff]
      %v244 = vld [vmem:[%s193 + $0x160] sm:$0xff]
      %v245 = vld [vmem:[%s193 + $0x168] sm:$0xff]
      %v246 = vld [vmem:[%s193 + $0x170] sm:$0xff]
      %v247 = vld [vmem:[%s193 + $0x178] sm:$0xff]
      %v248 = vld [vmem:[%s193 + $0x180] sm:$0xff]
      %v249 = vld [vmem:[%s193 + $0x188] sm:$0xff]
      %v250 = vld [vmem:[%s193 + $0x190] sm:$0xff]
      %v251 = vld [vmem:[%s193 + $0x198] sm:$0xff]
      %v252 = vld [vmem:[%s193 + $0x1a0] sm:$0xff]
      %v253 = vld [vmem:[%s193 + $0x1a8] sm:$0xff]
      %v254 = vld [vmem:[%s193 + $0x1b0] sm:$0xff]
      %v255 = vld [vmem:[%s193 + $0x1b8] sm:$0xff]
      %v256 = vld [vmem:[%s193 + $0x1c0] sm:$0xff]
      %v257 = vld [vmem:[%s193 + $0x1c8] sm:$0xff]
      %v258 = vld [vmem:[%s193 + $0x1d0] sm:$0xff]
      %v259 = vld [vmem:[%s193 + $0x1d8] sm:$0xff]
      %v260 = vld [vmem:[%s193 + $0x1e0] sm:$0xff]
      %v261 = vld [vmem:[%s193 + $0x1e8] sm:$0xff]
      %v262 = vld [vmem:[%s193 + $0x1f0] sm:$0xff]
      %v263 = vld [vmem:[%s193 + $0x1f8] sm:$0xff]
      %v264 = vpack.c.bf16 %v201, %v200
      %v265 = vpack.c.bf16 %v203, %v202
      %v266 = vpack.c.bf16 %v205, %v204
      %v267 = vpack.c.bf16 %v207, %v206
      %v268 = vpack.c.bf16 %v209, %v208
      %v269 = vpack.c.bf16 %v211, %v210
      %v270 = vpack.c.bf16 %v213, %v212
      %v271 = vpack.c.bf16 %v215, %v214
      %v272 = vpack.c.bf16 %v217, %v216
      %v273 = vpack.c.bf16 %v219, %v218
      %v274 = vpack.c.bf16 %v221, %v220
      %v275 = vpack.c.bf16 %v223, %v222
      %v276 = vpack.c.bf16 %v225, %v224
      %v277 = vpack.c.bf16 %v227, %v226
      %v278 = vpack.c.bf16 %v229, %v228
      %v279 = vpack.c.bf16 %v231, %v230
      %v280 = vpack.c.bf16 %v233, %v232
      %v281 = vpack.c.bf16 %v235, %v234
      %v282 = vpack.c.bf16 %v237, %v236
      %v283 = vpack.c.bf16 %v239, %v238
      %v284 = vpack.c.bf16 %v241, %v240
      %v285 = vpack.c.bf16 %v243, %v242
      %v286 = vpack.c.bf16 %v245, %v244
      %v287 = vpack.c.bf16 %v247, %v246
      %v288 = vpack.c.bf16 %v249, %v248
      %v289 = vpack.c.bf16 %v251, %v250
      %v290 = vpack.c.bf16 %v253, %v252
      %v291 = vpack.c.bf16 %v255, %v254
      %v292 = vpack.c.bf16 %v257, %v256
      %v293 = vpack.c.bf16 %v259, %v258
      %v294 = vpack.c.bf16 %v261, %v260
      %v295 = vpack.c.bf16 %v263, %v262
      %v296 = vld [vmem:[%s1] sm:$0xff]
      %v297 = vld [vmem:[%s1 + $0x8] sm:$0xff]
      %v298 = vld [vmem:[%s1 + $0x10] sm:$0xff]
      %v299 = vld [vmem:[%s1 + $0x18] sm:$0xff]
      %v300 = vld [vmem:[%s1 + $0x20] sm:$0xff]
      %v301 = vld [vmem:[%s1 + $0x28] sm:$0xff]
      %v302 = vld [vmem:[%s1 + $0x30] sm:$0xff]
      %v303 = vld [vmem:[%s1 + $0x38] sm:$0xff]
      %v304 = vld [vmem:[%s1 + $0x40] sm:$0xff]
      %v305 = vld [vmem:[%s1 + $0x48] sm:$0xff]
      %v306 = vld [vmem:[%s1 + $0x50] sm:$0xff]
      %v307 = vld [vmem:[%s1 + $0x58] sm:$0xff]
      %v308 = vld [vmem:[%s1 + $0x60] sm:$0xff]
      %v309 = vld [vmem:[%s1 + $0x68] sm:$0xff]
      %v310 = vld [vmem:[%s1 + $0x70] sm:$0xff]
      %v311 = vld [vmem:[%s1 + $0x78] sm:$0xff]
      %v312 = vld [vmem:[%s1 + $0x80] sm:$0xff]
      %v313 = vld [vmem:[%s1 + $0x88] sm:$0xff]
      %v314 = vld [vmem:[%s1 + $0x90] sm:$0xff]
      %v315 = vld [vmem:[%s1 + $0x98] sm:$0xff]
      %v316 = vld [vmem:[%s1 + $0xa0] sm:$0xff]
      %v317 = vld [vmem:[%s1 + $0xa8] sm:$0xff]
      %v318 = vld [vmem:[%s1 + $0xb0] sm:$0xff]
      %v319 = vld [vmem:[%s1 + $0xb8] sm:$0xff]
      %v320 = vld [vmem:[%s1 + $0xc0] sm:$0xff]
      %v321 = vld [vmem:[%s1 + $0xc8] sm:$0xff]
      %v322 = vld [vmem:[%s1 + $0xd0] sm:$0xff]
      %v323 = vld [vmem:[%s1 + $0xd8] sm:$0xff]
      %v324 = vld [vmem:[%s1 + $0xe0] sm:$0xff]
      %v325 = vld [vmem:[%s1 + $0xe8] sm:$0xff]
      %v326 = vld [vmem:[%s1 + $0xf0] sm:$0xff]
      %v327 = vld [vmem:[%s1 + $0xf8] sm:$0xff]
      %v328 = vld [vmem:[%s1 + $0x100] sm:$0xff]
      %v329 = vld [vmem:[%s1 + $0x108] sm:$0xff]
      %v330 = vld [vmem:[%s1 + $0x110] sm:$0xff]
      %v331 = vld [vmem:[%s1 + $0x118] sm:$0xff]
      %v332 = vld [vmem:[%s1 + $0x120] sm:$0xff]
      %v333 = vld [vmem:[%s1 + $0x128] sm:$0xff]
      %v334 = vld [vmem:[%s1 + $0x130] sm:$0xff]
      %v335 = vld [vmem:[%s1 + $0x138] sm:$0xff]
      %v336 = vld [vmem:[%s1 + $0x140] sm:$0xff]
      %v337 = vld [vmem:[%s1 + $0x148] sm:$0xff]
      %v338 = vld [vmem:[%s1 + $0x150] sm:$0xff]
      %v339 = vld [vmem:[%s1 + $0x158] sm:$0xff]
      %v340 = vld [vmem:[%s1 + $0x160] sm:$0xff]
      %v341 = vld [vmem:[%s1 + $0x168] sm:$0xff]
      %v342 = vld [vmem:[%s1 + $0x170] sm:$0xff]
      %v343 = vld [vmem:[%s1 + $0x178] sm:$0xff]
      %v392 = vunpack.c.l.b16 %v296
      %v393 = vunpack.c.h.b16 %v296
      %v394 = vunpack.c.l.b16 %v297
      %v395 = vunpack.c.h.b16 %v297
      %v396 = vunpack.c.l.b16 %v298
      %v397 = vunpack.c.h.b16 %v298
      %v398 = vunpack.c.l.b16 %v299
      %v399 = vunpack.c.h.b16 %v299
      %v400 = vunpack.c.l.b16 %v300
      %v401 = vunpack.c.h.b16 %v300
      %v402 = vunpack.c.l.b16 %v301
      %v403 = vunpack.c.h.b16 %v301
      %v404 = vunpack.c.l.b16 %v302
      %v405 = vunpack.c.h.b16 %v302
      %v406 = vunpack.c.l.b16 %v303
      %v407 = vunpack.c.h.b16 %v303
      %v408 = vunpack.c.l.b16 %v304
      %v409 = vunpack.c.h.b16 %v304
      %v410 = vunpack.c.l.b16 %v305
      %v411 = vunpack.c.h.b16 %v305
      %v412 = vunpack.c.l.b16 %v306
      %v413 = vunpack.c.h.b16 %v306
      %v414 = vunpack.c.l.b16 %v307
      %v415 = vunpack.c.h.b16 %v307
      %v416 = vunpack.c.l.b16 %v308
      %v417 = vunpack.c.h.b16 %v308
      %v418 = vunpack.c.l.b16 %v309
      %v419 = vunpack.c.h.b16 %v309
      %v420 = vunpack.c.l.b16 %v310
      %v421 = vunpack.c.h.b16 %v310
      %v422 = vunpack.c.l.b16 %v311
      %v423 = vunpack.c.h.b16 %v311
      %v424 = vunpack.c.l.b16 %v312
      %v425 = vunpack.c.h.b16 %v312
      %v426 = vunpack.c.l.b16 %v313
      %v427 = vunpack.c.h.b16 %v313
      %v428 = vunpack.c.l.b16 %v314
      %v429 = vunpack.c.h.b16 %v314
      %v430 = vunpack.c.l.b16 %v315
      %v431 = vunpack.c.h.b16 %v315
      %v432 = vunpack.c.l.b16 %v316
      %v433 = vunpack.c.h.b16 %v316
      %v434 = vunpack.c.l.b16 %v317
      %v435 = vunpack.c.h.b16 %v317
      %v436 = vunpack.c.l.b16 %v318
      %v437 = vunpack.c.h.b16 %v318
      %v438 = vunpack.c.l.b16 %v319
      %v439 = vunpack.c.h.b16 %v319
      %v440 = vunpack.c.l.b16 %v320
      %v441 = vunpack.c.h.b16 %v320
      %v442 = vunpack.c.l.b16 %v321
      %v443 = vunpack.c.h.b16 %v321
      %v444 = vunpack.c.l.b16 %v322
      %v445 = vunpack.c.h.b16 %v322
      %v446 = vunpack.c.l.b16 %v323
      %v447 = vunpack.c.h.b16 %v323
      %v448 = vunpack.c.l.b16 %v324
      %v449 = vunpack.c.h.b16 %v324
      %v450 = vunpack.c.l.b16 %v325
      %v451 = vunpack.c.h.b16 %v325
      %v452 = vunpack.c.l.b16 %v326
      %v453 = vunpack.c.h.b16 %v326
      %v454 = vunpack.c.l.b16 %v327
      %v455 = vunpack.c.h.b16 %v327
      %v456 = vunpack.c.l.b16 %v328
      %v457 = vunpack.c.h.b16 %v328
      %v458 = vunpack.c.l.b16 %v329
      %v459 = vunpack.c.h.b16 %v329
      %v460 = vunpack.c.l.b16 %v330
      %v461 = vunpack.c.h.b16 %v330
      %v462 = vunpack.c.l.b16 %v331
      %v463 = vunpack.c.h.b16 %v331
      %v464 = vunpack.c.l.b16 %v332
      %v465 = vunpack.c.h.b16 %v332
      %v466 = vunpack.c.l.b16 %v333
      %v467 = vunpack.c.h.b16 %v333
      %v468 = vunpack.c.l.b16 %v334
      %v469 = vunpack.c.h.b16 %v334
      %v470 = vunpack.c.l.b16 %v335
      %v471 = vunpack.c.h.b16 %v335
      %v472 = vunpack.c.l.b16 %v336
      %v473 = vunpack.c.h.b16 %v336
      %v474 = vunpack.c.l.b16 %v337
      %v475 = vunpack.c.h.b16 %v337
      %v476 = vunpack.c.l.b16 %v338
      %v477 = vunpack.c.h.b16 %v338
      %v478 = vunpack.c.l.b16 %v339
      %v479 = vunpack.c.h.b16 %v339
      %v480 = vunpack.c.l.b16 %v340
      %v481 = vunpack.c.h.b16 %v340
      %v482 = vunpack.c.l.b16 %v341
      %v483 = vunpack.c.h.b16 %v341
      %v484 = vunpack.c.l.b16 %v342
      %v485 = vunpack.c.h.b16 %v342
      %v486 = vunpack.c.l.b16 %v343
      %v487 = vunpack.c.h.b16 %v343
      %v488 = vpack.c.b16 %v396, %v392
      %v489 = vpack.c.b16 %v397, %v393
      %v490 = vpack.c.b16 %v398, %v394
      %v491 = vpack.c.b16 %v399, %v395
      %v492 = vpack.c.b16 %v404, %v400
      %v493 = vpack.c.b16 %v405, %v401
      %v494 = vpack.c.b16 %v406, %v402
      %v495 = vpack.c.b16 %v407, %v403
      %v496 = vpack.c.b16 %v412, %v408
      %v497 = vpack.c.b16 %v413, %v409
      %v498 = vpack.c.b16 %v414, %v410
      %v499 = vpack.c.b16 %v415, %v411
      %v500 = vpack.c.b16 %v420, %v416
      %v501 = vpack.c.b16 %v421, %v417
      %v502 = vpack.c.b16 %v422, %v418
      %v503 = vpack.c.b16 %v423, %v419
      %v504 = vpack.c.b16 %v428, %v424
      %v505 = vpack.c.b16 %v429, %v425
      %v506 = vpack.c.b16 %v430, %v426
      %v507 = vpack.c.b16 %v431, %v427
      %v508 = vpack.c.b16 %v436, %v432
      %v509 = vpack.c.b16 %v437, %v433
      %v510 = vpack.c.b16 %v438, %v434
      %v511 = vpack.c.b16 %v439, %v435
      %v512 = vpack.c.b16 %v444, %v440
      %v513 = vpack.c.b16 %v445, %v441
      %v514 = vpack.c.b16 %v446, %v442
      %v515 = vpack.c.b16 %v447, %v443
      %v516 = vpack.c.b16 %v452, %v448
      %v517 = vpack.c.b16 %v453, %v449
      %v518 = vpack.c.b16 %v454, %v450
      %v519 = vpack.c.b16 %v455, %v451
      %v520 = vpack.c.b16 %v460, %v456
      %v521 = vpack.c.b16 %v461, %v457
      %v522 = vpack.c.b16 %v462, %v458
      %v523 = vpack.c.b16 %v463, %v459
      %v524 = vpack.c.b16 %v468, %v464
      %v525 = vpack.c.b16 %v469, %v465
      %v526 = vpack.c.b16 %v470, %v466
      %v527 = vpack.c.b16 %v471, %v467
      %v528 = vpack.c.b16 %v476, %v472
      %v529 = vpack.c.b16 %v477, %v473
      %v530 = vpack.c.b16 %v478, %v474
      %v531 = vpack.c.b16 %v479, %v475
      %v532 = vpack.c.b16 %v484, %v480
      %v533 = vpack.c.b16 %v485, %v481
      %v534 = vpack.c.b16 %v486, %v482
      %v535 = vpack.c.b16 %v487, %v483
      %584 = vmatprep.subr.bf16.mxu0 0
      %585 = vmatpush1.bf16.msra.mxu0 %v271
      %586 = vmatprep.subr.bf16.mxu0 0
      %587 = vmatpush1.bf16.msra.mxu0 %v270
      %588 = vmatprep.subr.bf16.mxu0 0
      %589 = vmatpush1.bf16.msra.mxu0 %v269
      %590 = vmatprep.subr.bf16.mxu0 0
      %591 = vmatpush1.bf16.msra.mxu0 %v268
      %592 = vmatprep.subr.bf16.mxu0 0
      %593 = vmatpush1.bf16.msra.mxu0 %v267
      %594 = vmatprep.subr.bf16.mxu0 0
      %595 = vmatpush1.bf16.msra.mxu0 %v266
      %596 = vmatprep.subr.bf16.mxu0 0
      %597 = vmatpush1.bf16.msra.mxu0 %v265
      %598 = vmatprep.subr.bf16.mxu0 0
      %599 = vmatpush1.bf16.msra.mxu0 %v264
      %600 = vmatprep.subr.bf16.mxu0 0
      %601 = vmatpush2.bf16.msra.mxu0 %v279
      %602 = vmatprep.subr.bf16.mxu0 0
      %603 = vmatpush2.bf16.msra.mxu0 %v278
      %604 = vmatprep.subr.bf16.mxu0 0
      %605 = vmatpush2.bf16.msra.mxu0 %v277
      %606 = vmatprep.subr.bf16.mxu0 0
      %607 = vmatpush2.bf16.msra.mxu0 %v276
      %608 = vmatprep.subr.bf16.mxu0 0
      %609 = vmatpush2.bf16.msra.mxu0 %v275
      %610 = vmatprep.subr.bf16.mxu0 0
      %611 = vmatpush2.bf16.msra.mxu0 %v274
      %612 = vmatprep.subr.bf16.mxu0 0
      %613 = vmatpush2.bf16.msra.mxu0 %v273
      %614 = vmatprep.subr.bf16.mxu0 0
      %615 = vmatpush2.bf16.msra.mxu0 %v272
      %616 = vmatprep.mubr.bf16.mxu0 %v489
      %617 = vmatmul.mubr.bf16.gmra.mxu0 %v488
      %v618 = vpop.f32.mrf.mxu0
      %v619 = vadd.f32 0.0, %v618
      %v620 = vpop.f32.mrf.mxu0
      %v621 = vpop.f32.mrf.mxu0
      %v622 = vadd.f32 0.0, %v621
      %v623 = vpop.f32.mrf.mxu0
      %624 = vmatprep.mubr.bf16.mxu0 %v493
      %625 = vmatmul.mubr.bf16.gmra.mxu0 %v492
      %v626 = vpop.f32.mrf.mxu0
      %v627 = vadd.f32 0.0, %v626
      %v628 = vpop.f32.mrf.mxu0
      %v629 = vpop.f32.mrf.mxu0
      %v630 = vadd.f32 0.0, %v629
      %v631 = vpop.f32.mrf.mxu0
      %632 = vmatprep.mubr.bf16.mxu0 %v497
      %633 = vmatmul.mubr.bf16.gmra.mxu0 %v496
      %v634 = vpop.f32.mrf.mxu0
      %v635 = vadd.f32 0.0, %v634
      %v636 = vpop.f32.mrf.mxu0
      %v637 = vpop.f32.mrf.mxu0
      %v638 = vadd.f32 0.0, %v637
      %v639 = vpop.f32.mrf.mxu0
      %640 = vmatprep.mubr.bf16.mxu0 %v501
      %641 = vmatmul.mubr.bf16.gmra.mxu0 %v500
      %v642 = vpop.f32.mrf.mxu0
      %v643 = vadd.f32 0.0, %v642
      %v644 = vpop.f32.mrf.mxu0
      %v645 = vpop.f32.mrf.mxu0
      %v646 = vadd.f32 0.0, %v645
      %v647 = vpop.f32.mrf.mxu0
      %648 = vmatprep.mubr.bf16.mxu0 %v505
      %649 = vmatmul.mubr.bf16.gmra.mxu0 %v504
      %v650 = vpop.f32.mrf.mxu0
      %v651 = vadd.f32 0.0, %v650
      %v652 = vpop.f32.mrf.mxu0
      %v653 = vpop.f32.mrf.mxu0
      %v654 = vadd.f32 0.0, %v653
      %v655 = vpop.f32.mrf.mxu0
      %656 = vmatprep.mubr.bf16.mxu0 %v509
      %657 = vmatmul.mubr.bf16.gmra.mxu0 %v508
      %v658 = vpop.f32.mrf.mxu0
      %v659 = vadd.f32 0.0, %v658
      %v660 = vpop.f32.mrf.mxu0
      %v661 = vpop.f32.mrf.mxu0
      %v662 = vadd.f32 0.0, %v661
      %v663 = vpop.f32.mrf.mxu0
      %664 = vmatprep.mubr.bf16.mxu0 %v513
      %665 = vmatmul.mubr.bf16.gmra.mxu0 %v512
      %v666 = vpop.f32.mrf.mxu0
      %v667 = vadd.f32 0.0, %v666
      %v668 = vpop.f32.mrf.mxu0
      %v669 = vpop.f32.mrf.mxu0
      %v670 = vadd.f32 0.0, %v669
      %v671 = vpop.f32.mrf.mxu0
      %672 = vmatprep.mubr.bf16.mxu0 %v517
      %673 = vmatmul.mubr.bf16.gmra.mxu0 %v516
      %v674 = vpop.f32.mrf.mxu0
      %v675 = vadd.f32 0.0, %v674
      %v676 = vpop.f32.mrf.mxu0
      %v677 = vpop.f32.mrf.mxu0
      %v678 = vadd.f32 0.0, %v677
      %v679 = vpop.f32.mrf.mxu0
      %680 = vmatprep.mubr.bf16.mxu0 %v521
      %681 = vmatmul.mubr.bf16.gmra.mxu0 %v520
      %v682 = vpop.f32.mrf.mxu0
      %v683 = vadd.f32 0.0, %v682
      %v684 = vpop.f32.mrf.mxu0
      %v685 = vpop.f32.mrf.mxu0
      %v686 = vadd.f32 0.0, %v685
      %v687 = vpop.f32.mrf.mxu0
      %688 = vmatprep.mubr.bf16.mxu0 %v525
      %689 = vmatmul.mubr.bf16.gmra.mxu0 %v524
      %v690 = vpop.f32.mrf.mxu0
      %v691 = vadd.f32 0.0, %v690
      %v692 = vpop.f32.mrf.mxu0
      %v693 = vpop.f32.mrf.mxu0
      %v694 = vadd.f32 0.0, %v693
      %v695 = vpop.f32.mrf.mxu0
      %696 = vmatprep.mubr.bf16.mxu0 %v529
      %697 = vmatmul.mubr.bf16.gmra.mxu0 %v528
      %v698 = vpop.f32.mrf.mxu0
      %v699 = vadd.f32 0.0, %v698
      %v700 = vpop.f32.mrf.mxu0
      %v701 = vpop.f32.mrf.mxu0
      %v702 = vadd.f32 0.0, %v701
      %v703 = vpop.f32.mrf.mxu0
      %704 = vmatprep.mubr.bf16.mxu0 %v533
      %705 = vmatmul.mubr.bf16.gmra.mxu0 %v532
      %v706 = vpop.f32.mrf.mxu0
      %v707 = vadd.f32 0.0, %v706
      %v708 = vpop.f32.mrf.mxu0
      %v709 = vpop.f32.mrf.mxu0
      %v710 = vadd.f32 0.0, %v709
      %v711 = vpop.f32.mrf.mxu0
      %712 = vdwg.mxu0
      %713 = vmatprep.subr.bf16.mxu0 0
      %714 = vmatpush1.bf16.msra.mxu0 %v287
      %715 = vmatprep.subr.bf16.mxu0 0
      %716 = vmatpush1.bf16.msra.mxu0 %v286
      %717 = vmatprep.subr.bf16.mxu0 0
      %718 = vmatpush1.bf16.msra.mxu0 %v285
      %719 = vmatprep.subr.bf16.mxu0 0
      %720 = vmatpush1.bf16.msra.mxu0 %v284
      %721 = vmatprep.subr.bf16.mxu0 0
      %722 = vmatpush1.bf16.msra.mxu0 %v283
      %723 = vmatprep.subr.bf16.mxu0 0
      %724 = vmatpush1.bf16.msra.mxu0 %v282
      %725 = vmatprep.subr.bf16.mxu0 0
      %726 = vmatpush1.bf16.msra.mxu0 %v281
      %727 = vmatprep.subr.bf16.mxu0 0
      %728 = vmatpush1.bf16.msra.mxu0 %v280
      %729 = vmatprep.subr.bf16.mxu0 0
      %730 = vmatpush2.bf16.msra.mxu0 %v295
      %731 = vmatprep.subr.bf16.mxu0 0
      %732 = vmatpush2.bf16.msra.mxu0 %v294
      %733 = vmatprep.subr.bf16.mxu0 0
      %734 = vmatpush2.bf16.msra.mxu0 %v293
      %735 = vmatprep.subr.bf16.mxu0 0
      %736 = vmatpush2.bf16.msra.mxu0 %v292
      %737 = vmatprep.subr.bf16.mxu0 0
      %738 = vmatpush2.bf16.msra.mxu0 %v291
      %739 = vmatprep.subr.bf16.mxu0 0
      %740 = vmatpush2.bf16.msra.mxu0 %v290
      %741 = vmatprep.subr.bf16.mxu0 0
      %742 = vmatpush2.bf16.msra.mxu0 %v289
      %743 = vmatprep.subr.bf16.mxu0 0
      %744 = vmatpush2.bf16.msra.mxu0 %v288
      %745 = vmatprep.mubr.bf16.mxu0 %v491
      %746 = vmatmul.mubr.bf16.gmra.mxu0 %v490
      %v747 = vpop.f32.mrf.mxu0
      %v748 = vadd.f32 %v619, %v747
      %v749 = vpop.f32.mrf.mxu0
      %v750 = vpop.f32.mrf.mxu0
      %v751 = vadd.f32 %v622, %v750
      %v752 = vpop.f32.mrf.mxu0
      %753 = vmatprep.mubr.bf16.mxu0 %v495
      %754 = vmatmul.mubr.bf16.gmra.mxu0 %v494
      %v755 = vpop.f32.mrf.mxu0
      %v756 = vadd.f32 %v627, %v755
      %v757 = vpop.f32.mrf.mxu0
      %v758 = vpop.f32.mrf.mxu0
      %v759 = vadd.f32 %v630, %v758
      %v760 = vpop.f32.mrf.mxu0
      %761 = vmatprep.mubr.bf16.mxu0 %v499
      %762 = vmatmul.mubr.bf16.gmra.mxu0 %v498
      %v763 = vpop.f32.mrf.mxu0
      %v764 = vadd.f32 %v635, %v763
      %v765 = vpop.f32.mrf.mxu0
      %v766 = vpop.f32.mrf.mxu0
      %v767 = vadd.f32 %v638, %v766
      %v768 = vpop.f32.mrf.mxu0
      %769 = vmatprep.mubr.bf16.mxu0 %v503
      %770 = vmatmul.mubr.bf16.gmra.mxu0 %v502
      %v771 = vpop.f32.mrf.mxu0
      %v772 = vadd.f32 %v643, %v771
      %v773 = vpop.f32.mrf.mxu0
      %v774 = vpop.f32.mrf.mxu0
      %v775 = vadd.f32 %v646, %v774
      %v776 = vpop.f32.mrf.mxu0
      %777 = vmatprep.mubr.bf16.mxu0 %v507
      %778 = vmatmul.mubr.bf16.gmra.mxu0 %v506
      %v779 = vpop.f32.mrf.mxu0
      %v780 = vadd.f32 %v651, %v779
      %v781 = vpop.f32.mrf.mxu0
      %v782 = vpop.f32.mrf.mxu0
      %v783 = vadd.f32 %v654, %v782
      %v784 = vpop.f32.mrf.mxu0
      %785 = vmatprep.mubr.bf16.mxu0 %v511
      %786 = vmatmul.mubr.bf16.gmra.mxu0 %v510
      %v787 = vpop.f32.mrf.mxu0
      %v788 = vadd.f32 %v659, %v787
      %v789 = vpop.f32.mrf.mxu0
      %v790 = vpop.f32.mrf.mxu0
      %v791 = vadd.f32 %v662, %v790
      %v792 = vpop.f32.mrf.mxu0
      %793 = vmatprep.mubr.bf16.mxu0 %v515
      %794 = vmatmul.mubr.bf16.gmra.mxu0 %v514
      %v795 = vpop.f32.mrf.mxu0
      %v796 = vadd.f32 %v667, %v795
      %v797 = vpop.f32.mrf.mxu0
      %v798 = vpop.f32.mrf.mxu0
      %v799 = vadd.f32 %v670, %v798
      %v800 = vpop.f32.mrf.mxu0
      %801 = vmatprep.mubr.bf16.mxu0 %v519
      %802 = vmatmul.mubr.bf16.gmra.mxu0 %v518
      %v803 = vpop.f32.mrf.mxu0
      %v804 = vadd.f32 %v675, %v803
      %v805 = vpop.f32.mrf.mxu0
      %v806 = vpop.f32.mrf.mxu0
      %v807 = vadd.f32 %v678, %v806
      %v808 = vpop.f32.mrf.mxu0
      %809 = vmatprep.mubr.bf16.mxu0 %v523
      %810 = vmatmul.mubr.bf16.gmra.mxu0 %v522
      %v811 = vpop.f32.mrf.mxu0
      %v812 = vadd.f32 %v683, %v811
      %v813 = vpop.f32.mrf.mxu0
      %v814 = vpop.f32.mrf.mxu0
      %v815 = vadd.f32 %v686, %v814
      %v816 = vpop.f32.mrf.mxu0
      %817 = vmatprep.mubr.bf16.mxu0 %v527
      %818 = vmatmul.mubr.bf16.gmra.mxu0 %v526
      %v819 = vpop.f32.mrf.mxu0
      %v820 = vadd.f32 %v691, %v819
      %v821 = vpop.f32.mrf.mxu0
      %v822 = vpop.f32.mrf.mxu0
      %v823 = vadd.f32 %v694, %v822
      %v824 = vpop.f32.mrf.mxu0
      %825 = vmatprep.mubr.bf16.mxu0 %v531
      %826 = vmatmul.mubr.bf16.gmra.mxu0 %v530
      %v827 = vpop.f32.mrf.mxu0
      %v828 = vadd.f32 %v699, %v827
      %v829 = vpop.f32.mrf.mxu0
      %v830 = vpop.f32.mrf.mxu0
      %v831 = vadd.f32 %v702, %v830
      %v832 = vpop.f32.mrf.mxu0
      %833 = vmatprep.mubr.bf16.mxu0 %v535
      %834 = vmatmul.mubr.bf16.gmra.mxu0 %v534
      %v835 = vpop.f32.mrf.mxu0
      %v836 = vadd.f32 %v707, %v835
      %v837 = vpop.f32.mrf.mxu0
      %v838 = vpop.f32.mrf.mxu0
      %v839 = vadd.f32 %v710, %v838
      %v840 = vpop.f32.mrf.mxu0
      %841 = vdwg.mxu0
      %v842 = vpack.c.bf16 %v751, %v748
      %v843 = vpack.c.bf16 %v759, %v756
      %v844 = vpack.c.bf16 %v767, %v764
      %v845 = vpack.c.bf16 %v775, %v772
      %v846 = vpack.c.bf16 %v783, %v780
      %v847 = vpack.c.bf16 %v791, %v788
      %v848 = vpack.c.bf16 %v799, %v796
      %v849 = vpack.c.bf16 %v807, %v804
      %v850 = vpack.c.bf16 %v815, %v812
      %v851 = vpack.c.bf16 %v823, %v820
      %v852 = vpack.c.bf16 %v831, %v828
      %v853 = vpack.c.bf16 %v839, %v836
      %vm854 = vcmask 130048
      %v856 = vsel %vm854, %v842, 0
      %v859 = vsel %vm854, %v843, 0
      %v862 = vsel %vm854, %v844, 0
      %v865 = vsel %vm854, %v845, 0
      %v868 = vsel %vm854, %v846, 0
      %v871 = vsel %vm854, %v847, 0
      %v874 = vsel %vm854, %v848, 0
      %v877 = vsel %vm854, %v849, 0
      %879 = vmatprep.subr.bf16.mxu0 0
      %880 = vmatpush1.bf16.xpose.msra.mxu0 0
      %881 = vmatprep.subr.bf16.mxu0 0
      %882 = vmatpush1.bf16.xpose.msra.mxu0 0
      %883 = vmatprep.subr.bf16.mxu0 0
      %884 = vmatpush1.bf16.xpose.msra.mxu0 0
      %885 = vmatprep.subr.bf16.mxu0 0
      %886 = vmatpush1.bf16.xpose.msra.mxu0 0
      %887 = vmatprep.subr.bf16.mxu0 0
      %888 = vmatpush1.bf16.xpose.msra.mxu0 %v877
      %889 = vmatprep.subr.bf16.mxu0 0
      %890 = vmatpush1.bf16.xpose.msra.mxu0 %v874
      %891 = vmatprep.subr.bf16.mxu0 0
      %892 = vmatpush1.bf16.xpose.msra.mxu0 %v871
      %893 = vmatprep.subr.bf16.mxu0 0
      %894 = vmatpush1.bf16.xpose.msra.mxu0 %v868
      %895 = vmatprep.subr.bf16.mxu0 0
      %896 = vmatpush2.bf16.xpose.msra.mxu0 0
      %897 = vmatprep.subr.bf16.mxu0 0
      %898 = vmatpush2.bf16.xpose.msra.mxu0 0
      %899 = vmatprep.subr.bf16.mxu0 0
      %900 = vmatpush2.bf16.xpose.msra.mxu0 0
      %901 = vmatprep.subr.bf16.mxu0 0
      %902 = vmatpush2.bf16.xpose.msra.mxu0 0
      %903 = vmatprep.subr.bf16.mxu0 0
      %904 = vmatpush2.bf16.xpose.msra.mxu0 0
      %905 = vmatprep.subr.bf16.mxu0 0
      %906 = vmatpush2.bf16.xpose.msra.mxu0 0
      %907 = vmatprep.subr.bf16.mxu0 0
      %908 = vmatpush2.bf16.xpose.msra.mxu0 0
      %909 = vmatprep.subr.bf16.mxu0 0
      %910 = vmatpush2.bf16.xpose.msra.mxu0 0
      %911 = vmatprep.mubr.bf16.mxu0 0
      %912 = vmatmul.mubr.bf16.gmra.mxu0 %v856
      %v913 = vpop.f32.mrf.mxu0
      %v914 = vadd.f32 0.0, %v913
      %v915 = vpop.f32.mrf.mxu0
      %v916 = vpop.f32.mrf.mxu0
      %v917 = vadd.f32 0.0, %v916
      %v918 = vpop.f32.mrf.mxu0
      %919 = vmatprep.mubr.bf16.mxu0 0
      %920 = vmatmul.mubr.bf16.gmra.mxu0 %v859
      %v921 = vpop.f32.mrf.mxu0
      %v922 = vadd.f32 0.0, %v921
      %v923 = vpop.f32.mrf.mxu0
      %v924 = vpop.f32.mrf.mxu0
      %v925 = vadd.f32 0.0, %v924
      %v926 = vpop.f32.mrf.mxu0
      %927 = vmatprep.mubr.bf16.mxu0 0
      %928 = vmatmul.mubr.bf16.gmra.mxu0 %v862
      %v929 = vpop.f32.mrf.mxu0
      %v930 = vadd.f32 0.0, %v929
      %v931 = vpop.f32.mrf.mxu0
      %v932 = vpop.f32.mrf.mxu0
      %v933 = vadd.f32 0.0, %v932
      %v934 = vpop.f32.mrf.mxu0
      %935 = vmatprep.mubr.bf16.mxu0 0
      %936 = vmatmul.mubr.bf16.gmra.mxu0 %v865
      %v937 = vpop.f32.mrf.mxu0
      %v938 = vadd.f32 0.0, %v937
      %v939 = vpop.f32.mrf.mxu0
      %v940 = vpop.f32.mrf.mxu0
      %v941 = vadd.f32 0.0, %v940
      %v942 = vpop.f32.mrf.mxu0
      %943 = vdwg.mxu0
      %vm944 = vcmask 523264
      %v945 = vsel %vm944, %v914, -inf
      %946 = vmax.xlane.f32.xlu0 %v945
      %v947 = vpop.xlane.xlu0 %946
      %v948 = vsel %vm944, %v917, -inf
      %949 = vmax.xlane.f32.xlu0 %v948
      %v950 = vpop.xlane.xlu0 %949
      %v951 = vsel %vm944, %v922, -inf
      %952 = vmax.xlane.f32.xlu0 %v951
      %v953 = vpop.xlane.xlu0 %952
      %v954 = vsel %vm944, %v925, -inf
      %955 = vmax.xlane.f32.xlu0 %v954
      %v956 = vpop.xlane.xlu0 %955
      %v957 = vsel %vm944, %v930, -inf
      %958 = vmax.xlane.f32.xlu0 %v957
      %v959 = vpop.xlane.xlu0 %958
      %v960 = vsel %vm944, %v933, -inf
      %961 = vmax.xlane.f32.xlu0 %v960
      %v962 = vpop.xlane.xlu0 %961
      %v963 = vsel %vm944, %v938, -inf
      %964 = vmax.xlane.f32.xlu0 %v963
      %v965 = vpop.xlane.xlu0 %964
      %v966 = vsel %vm944, %v941, -inf
      %967 = vmax.xlane.f32.xlu0 %v966
      %v968 = vpop.xlane.xlu0 %967
      %v969 = vsub.f32 %v914, %v947
      %v970 = vsub.f32 %v917, %v950
      %v971 = vsub.f32 %v922, %v953
      %v972 = vsub.f32 %v925, %v956
      %v973 = vsub.f32 %v930, %v959
      %v974 = vsub.f32 %v933, %v962
      %v975 = vsub.f32 %v938, %v965
      %v976 = vsub.f32 %v941, %v968
      %v977 = vmul.f32 %v969, 1.442695
      %v978 = vpow.pop %v977
      %v979 = vmul.f32 %v970, 1.442695
      %v980 = vpow.pop %v979
      %v981 = vmul.f32 %v971, 1.442695
      %v982 = vpow.pop %v981
      %v983 = vmul.f32 %v972, 1.442695
      %v984 = vpow.pop %v983
      %v985 = vmul.f32 %v973, 1.442695
      %v986 = vpow.pop %v985
      %v987 = vmul.f32 %v974, 1.442695
      %v988 = vpow.pop %v987
      %v989 = vmul.f32 %v975, 1.442695
      %v990 = vpow.pop %v989
      %v991 = vmul.f32 %v976, 1.442695
      %v992 = vpow.pop %v991
      %v993 = vsel %vm944, %v978, 0.0
      %994 = vadd.xlane.f32.xlu0 %v993
      %v995 = vpop.xlane.xlu0 %994
      %v996 = vsel %vm944, %v980, 0.0
      %997 = vadd.xlane.f32.xlu0 %v996
      %v998 = vpop.xlane.xlu0 %997
      %v999 = vsel %vm944, %v982, 0.0
      %1000 = vadd.xlane.f32.xlu0 %v999
      %v1001 = vpop.xlane.xlu0 %1000
      %v1002 = vsel %vm944, %v984, 0.0
      %1003 = vadd.xlane.f32.xlu0 %v1002
      %v1004 = vpop.xlane.xlu0 %1003
      %v1005 = vsel %vm944, %v986, 0.0
      %1006 = vadd.xlane.f32.xlu0 %v1005
      %v1007 = vpop.xlane.xlu0 %1006
      %v1008 = vsel %vm944, %v988, 0.0
      %1009 = vadd.xlane.f32.xlu0 %v1008
      %v1010 = vpop.xlane.xlu0 %1009
      %v1011 = vsel %vm944, %v990, 0.0
      %1012 = vadd.xlane.f32.xlu0 %v1011
      %v1013 = vpop.xlane.xlu0 %1012
      %v1014 = vsel %vm944, %v992, 0.0
      %1015 = vadd.xlane.f32.xlu0 %v1014
      %v1016 = vpop.xlane.xlu0 %1015
      %v1017 = vrcp.pop %v995
      %v1018 = vrcp.pop %v998
      %v1019 = vrcp.pop %v1001
      %v1020 = vrcp.pop %v1004
      %v1021 = vrcp.pop %v1007
      %v1022 = vrcp.pop %v1010
      %v1023 = vrcp.pop %v1013
      %v1024 = vrcp.pop %v1016
      %v1025 = vmul.f32 %v978, %v1017
      %v1026 = vmul.f32 %v980, %v1018
      %v1027 = vmul.f32 %v982, %v1019
      %v1028 = vmul.f32 %v984, %v1020
      %v1029 = vmul.f32 %v986, %v1021
      %v1030 = vmul.f32 %v988, %v1022
      %v1031 = vmul.f32 %v990, %v1023
      %v1032 = vmul.f32 %v992, %v1024
      %v1033 = vpack.c.bf16 %v1026, %v1025
      %v1034 = vpack.c.bf16 %v1028, %v1027
      %v1035 = vpack.c.bf16 %v1030, %v1029
      %v1036 = vpack.c.bf16 %v1032, %v1031
      %v1038 = vsel %vm944, %v1033, 0
      %v1041 = vsel %vm944, %v1034, 0
      %v1044 = vsel %vm944, %v1035, 0
      %v1047 = vsel %vm944, %v1036, 0
      %1049 = vmatprep.subr.bf16.mxu0 0
      %1050 = vmatpush1.bf16.msra.mxu0 0
      %1051 = vmatprep.subr.bf16.mxu0 0
      %1052 = vmatpush1.bf16.msra.mxu0 0
      %1053 = vmatprep.subr.bf16.mxu0 0
      %1054 = vmatpush1.bf16.msra.mxu0 0
      %1055 = vmatprep.subr.bf16.mxu0 0
      %1056 = vmatpush1.bf16.msra.mxu0 0
      %1057 = vmatprep.subr.bf16.mxu0 0
      %1058 = vmatpush1.bf16.msra.mxu0 %v853
      %1059 = vmatprep.subr.bf16.mxu0 0
      %1060 = vmatpush1.bf16.msra.mxu0 %v852
      %1061 = vmatprep.subr.bf16.mxu0 0
      %1062 = vmatpush1.bf16.msra.mxu0 %v851
      %1063 = vmatprep.subr.bf16.mxu0 0
      %1064 = vmatpush1.bf16.msra.mxu0 %v850
      %1065 = vmatprep.subr.bf16.mxu0 0
      %1066 = vmatpush2.bf16.msra.mxu0 0
      %1067 = vmatprep.subr.bf16.mxu0 0
      %1068 = vmatpush2.bf16.msra.mxu0 0
      %1069 = vmatprep.subr.bf16.mxu0 0
      %1070 = vmatpush2.bf16.msra.mxu0 0
      %1071 = vmatprep.subr.bf16.mxu0 0
      %1072 = vmatpush2.bf16.msra.mxu0 0
      %1073 = vmatprep.subr.bf16.mxu0 0
      %1074 = vmatpush2.bf16.msra.mxu0 0
      %1075 = vmatprep.subr.bf16.mxu0 0
      %1076 = vmatpush2.bf16.msra.mxu0 0
      %1077 = vmatprep.subr.bf16.mxu0 0
      %1078 = vmatpush2.bf16.msra.mxu0 0
      %1079 = vmatprep.subr.bf16.mxu0 0
      %1080 = vmatpush2.bf16.msra.mxu0 0
      %1081 = vmatprep.mubr.bf16.mxu0 0
      %1082 = vmatmul.mubr.bf16.gmra.mxu0 %v1038
      %v1083 = vpop.f32.mrf.mxu0
      %v1084 = vadd.f32 0.0, %v1083
      %v1085 = vpop.f32.mrf.mxu0
      %v1086 = vpop.f32.mrf.mxu0
      %v1087 = vadd.f32 0.0, %v1086
      %v1088 = vpop.f32.mrf.mxu0
      %1089 = vmatprep.mubr.bf16.mxu0 0
      %1090 = vmatmul.mubr.bf16.gmra.mxu0 %v1041
      %v1091 = vpop.f32.mrf.mxu0
      %v1092 = vadd.f32 0.0, %v1091
      %v1093 = vpop.f32.mrf.mxu0
      %v1094 = vpop.f32.mrf.mxu0
      %v1095 = vadd.f32 0.0, %v1094
      %v1096 = vpop.f32.mrf.mxu0
      %1097 = vmatprep.mubr.bf16.mxu0 0
      %1098 = vmatmul.mubr.bf16.gmra.mxu0 %v1044
      %v1099 = vpop.f32.mrf.mxu0
      %v1100 = vadd.f32 0.0, %v1099
      %v1101 = vpop.f32.mrf.mxu0
      %v1102 = vpop.f32.mrf.mxu0
      %v1103 = vadd.f32 0.0, %v1102
      %v1104 = vpop.f32.mrf.mxu0
      %1105 = vmatprep.mubr.bf16.mxu0 0
      %1106 = vmatmul.mubr.bf16.gmra.mxu0 %v1047
      %v1107 = vpop.f32.mrf.mxu0
      %v1108 = vadd.f32 0.0, %v1107
      %v1109 = vpop.f32.mrf.mxu0
      %v1110 = vpop.f32.mrf.mxu0
      %v1111 = vadd.f32 0.0, %v1110
      %v1112 = vpop.f32.mrf.mxu0
      %1113 = vdwg.mxu0
      %v1114 = vld [vmem:[%s2] sm:$0xf]
      %v1115 = vld [vmem:[%s2 + $0x4] sm:$0xf]
      %v1116 = vld [vmem:[%s2 + $0x8] sm:$0xf]
      %v1117 = vld [vmem:[%s2 + $0xc] sm:$0xf]
      %v1118 = vld [vmem:[%s2 + $0x10] sm:$0xf]
      %v1119 = vld [vmem:[%s2 + $0x14] sm:$0xf]
      %v1120 = vld [vmem:[%s2 + $0x18] sm:$0xf]
      %v1121 = vld [vmem:[%s2 + $0x1c] sm:$0xf]
      %v1122 = vld [vmem:[%s2 + $0x20] sm:$0xf]
      %v1123 = vld [vmem:[%s2 + $0x24] sm:$0xf]
      %v1124 = vld [vmem:[%s2 + $0x28] sm:$0xf]
      %v1125 = vld [vmem:[%s2 + $0x2c] sm:$0xf]
      %v1126 = vld [vmem:[%s2 + $0x30] sm:$0xf]
      %v1127 = vld [vmem:[%s2 + $0x34] sm:$0xf]
      %v1128 = vld [vmem:[%s2 + $0x38] sm:$0xf]
      %v1129 = vld [vmem:[%s2 + $0x3c] sm:$0xf]
      %v1130 = vld [vmem:[%s2 + $0x40] sm:$0xf]
      %v1131 = vld [vmem:[%s2 + $0x44] sm:$0xf]
      %v1132 = vld [vmem:[%s2 + $0x48] sm:$0xf]
      %v1133 = vld [vmem:[%s2 + $0x4c] sm:$0xf]
      %v1134 = vld [vmem:[%s2 + $0x50] sm:$0xf]
      %v1135 = vld [vmem:[%s2 + $0x54] sm:$0xf]
      %v1136 = vld [vmem:[%s2 + $0x58] sm:$0xf]
      %v1137 = vld [vmem:[%s2 + $0x5c] sm:$0xf]
      %v1138 = vld [vmem:[%s2 + $0x60] sm:$0xf]
      %v1139 = vld [vmem:[%s2 + $0x64] sm:$0xf]
      %v1140 = vld [vmem:[%s2 + $0x68] sm:$0xf]
      %v1141 = vld [vmem:[%s2 + $0x6c] sm:$0xf]
      %v1142 = vld [vmem:[%s2 + $0x70] sm:$0xf]
      %v1143 = vld [vmem:[%s2 + $0x74] sm:$0xf]
      %v1144 = vld [vmem:[%s2 + $0x78] sm:$0xf]
      %v1145 = vld [vmem:[%s2 + $0x7c] sm:$0xf]
      %v1146 = vld [vmem:[%s2 + $0x80] sm:$0xf]
      %v1147 = vld [vmem:[%s2 + $0x84] sm:$0xf]
      %v1148 = vld [vmem:[%s2 + $0x88] sm:$0xf]
      %v1149 = vld [vmem:[%s2 + $0x8c] sm:$0xf]
      %v1150 = vld [vmem:[%s2 + $0x90] sm:$0xf]
      %v1151 = vld [vmem:[%s2 + $0x94] sm:$0xf]
      %v1152 = vld [vmem:[%s2 + $0x98] sm:$0xf]
      %v1153 = vld [vmem:[%s2 + $0x9c] sm:$0xf]
      %v1154 = vld [vmem:[%s2 + $0xa0] sm:$0xf]
      %v1155 = vld [vmem:[%s2 + $0xa4] sm:$0xf]
      %v1156 = vld [vmem:[%s2 + $0xa8] sm:$0xf]
      %v1157 = vld [vmem:[%s2 + $0xac] sm:$0xf]
      %v1158 = vld [vmem:[%s2 + $0xb0] sm:$0xf]
      %v1159 = vld [vmem:[%s2 + $0xb4] sm:$0xf]
      %v1160 = vld [vmem:[%s2 + $0xb8] sm:$0xf]
      %v1161 = vld [vmem:[%s2 + $0xbc] sm:$0xf]
      %v1162 = vld [vmem:[%s2 + $0xc0] sm:$0xf]
      %v1163 = vld [vmem:[%s2 + $0xc4] sm:$0xf]
      %v1164 = vld [vmem:[%s2 + $0xc8] sm:$0xf]
      %v1165 = vld [vmem:[%s2 + $0xcc] sm:$0xf]
      %v1166 = vld [vmem:[%s2 + $0xd0] sm:$0xf]
      %v1167 = vld [vmem:[%s2 + $0xd4] sm:$0xf]
      %v1168 = vld [vmem:[%s2 + $0xd8] sm:$0xf]
      %v1169 = vld [vmem:[%s2 + $0xdc] sm:$0xf]
      %v1170 = vld [vmem:[%s2 + $0xe0] sm:$0xf]
      %v1171 = vld [vmem:[%s2 + $0xe4] sm:$0xf]
      %v1172 = vld [vmem:[%s2 + $0xe8] sm:$0xf]
      %v1173 = vld [vmem:[%s2 + $0xec] sm:$0xf]
      %v1174 = vld [vmem:[%s2 + $0xf0] sm:$0xf]
      %v1175 = vld [vmem:[%s2 + $0xf4] sm:$0xf]
      %v1176 = vld [vmem:[%s2 + $0xf8] sm:$0xf]
      %v1177 = vld [vmem:[%s2 + $0xfc] sm:$0xf]
      %v1178 = vpack.c.bf16 %v1087, %v1084
      %v1179 = vpack.c.bf16 %v1095, %v1092
      %v1180 = vpack.c.bf16 %v1103, %v1100
      %v1181 = vpack.c.bf16 %v1111, %v1108
      %v1246 = vunpack.c.l.b16 %v1114
      %v1247 = vunpack.c.l.b16 %v1115
      %v1248 = vunpack.c.l.b16 %v1116
      %v1249 = vunpack.c.l.b16 %v1117
      %v1250 = vunpack.c.l.b16 %v1118
      %v1251 = vunpack.c.l.b16 %v1119
      %v1252 = vunpack.c.l.b16 %v1120
      %v1253 = vunpack.c.l.b16 %v1121
      %v1254 = vunpack.c.l.b16 %v1122
      %v1255 = vunpack.c.l.b16 %v1123
      %v1256 = vunpack.c.l.b16 %v1124
      %v1257 = vunpack.c.l.b16 %v1125
      %v1258 = vunpack.c.l.b16 %v1126
      %v1259 = vunpack.c.l.b16 %v1127
      %v1260 = vunpack.c.l.b16 %v1128
      %v1261 = vunpack.c.l.b16 %v1129
      %v1262 = vunpack.c.l.b16 %v1130
      %v1263 = vunpack.c.l.b16 %v1131
      %v1264 = vunpack.c.l.b16 %v1132
      %v1265 = vunpack.c.l.b16 %v1133
      %v1266 = vunpack.c.l.b16 %v1134
      %v1267 = vunpack.c.l.b16 %v1135
      %v1268 = vunpack.c.l.b16 %v1136
      %v1269 = vunpack.c.l.b16 %v1137
      %v1270 = vunpack.c.l.b16 %v1138
      %v1271 = vunpack.c.l.b16 %v1139
      %v1272 = vunpack.c.l.b16 %v1140
      %v1273 = vunpack.c.l.b16 %v1141
      %v1274 = vunpack.c.l.b16 %v1142
      %v1275 = vunpack.c.l.b16 %v1143
      %v1276 = vunpack.c.l.b16 %v1144
      %v1277 = vunpack.c.l.b16 %v1145
      %v1278 = vunpack.c.l.b16 %v1146
      %v1279 = vunpack.c.l.b16 %v1147
      %v1280 = vunpack.c.l.b16 %v1148
      %v1281 = vunpack.c.l.b16 %v1149
      %v1282 = vunpack.c.l.b16 %v1150
      %v1283 = vunpack.c.l.b16 %v1151
      %v1284 = vunpack.c.l.b16 %v1152
      %v1285 = vunpack.c.l.b16 %v1153
      %v1286 = vunpack.c.l.b16 %v1154
      %v1287 = vunpack.c.l.b16 %v1155
      %v1288 = vunpack.c.l.b16 %v1156
      %v1289 = vunpack.c.l.b16 %v1157
      %v1290 = vunpack.c.l.b16 %v1158
      %v1291 = vunpack.c.l.b16 %v1159
      %v1292 = vunpack.c.l.b16 %v1160
      %v1293 = vunpack.c.l.b16 %v1161
      %v1294 = vunpack.c.l.b16 %v1162
      %v1295 = vunpack.c.l.b16 %v1163
      %v1296 = vunpack.c.l.b16 %v1164
      %v1297 = vunpack.c.l.b16 %v1165
      %v1298 = vunpack.c.l.b16 %v1166
      %v1299 = vunpack.c.l.b16 %v1167
      %v1300 = vunpack.c.l.b16 %v1168
      %v1301 = vunpack.c.l.b16 %v1169
      %v1302 = vunpack.c.l.b16 %v1170
      %v1303 = vunpack.c.l.b16 %v1171
      %v1304 = vunpack.c.l.b16 %v1172
      %v1305 = vunpack.c.l.b16 %v1173
      %v1306 = vunpack.c.l.b16 %v1174
      %v1307 = vunpack.c.l.b16 %v1175
      %v1308 = vunpack.c.l.b16 %v1176
      %v1309 = vunpack.c.l.b16 %v1177
      %v1310 = vpack.c.b16 %v1247, %v1246
      %v1311 = vpack.c.b16 %v1249, %v1248
      %v1312 = vpack.c.b16 %v1251, %v1250
      %v1313 = vpack.c.b16 %v1253, %v1252
      %v1314 = vpack.c.b16 %v1255, %v1254
      %v1315 = vpack.c.b16 %v1257, %v1256
      %v1316 = vpack.c.b16 %v1259, %v1258
      %v1317 = vpack.c.b16 %v1261, %v1260
      %v1318 = vpack.c.b16 %v1263, %v1262
      %v1319 = vpack.c.b16 %v1265, %v1264
      %v1320 = vpack.c.b16 %v1267, %v1266
      %v1321 = vpack.c.b16 %v1269, %v1268
      %v1322 = vpack.c.b16 %v1271, %v1270
      %v1323 = vpack.c.b16 %v1273, %v1272
      %v1324 = vpack.c.b16 %v1275, %v1274
      %v1325 = vpack.c.b16 %v1277, %v1276
      %v1326 = vpack.c.b16 %v1279, %v1278
      %v1327 = vpack.c.b16 %v1281, %v1280
      %v1328 = vpack.c.b16 %v1283, %v1282
      %v1329 = vpack.c.b16 %v1285, %v1284
      %v1330 = vpack.c.b16 %v1287, %v1286
      %v1331 = vpack.c.b16 %v1289, %v1288
      %v1332 = vpack.c.b16 %v1291, %v1290
      %v1333 = vpack.c.b16 %v1293, %v1292
      %v1334 = vpack.c.b16 %v1295, %v1294
      %v1335 = vpack.c.b16 %v1297, %v1296
      %v1336 = vpack.c.b16 %v1299, %v1298
      %v1337 = vpack.c.b16 %v1301, %v1300
      %v1338 = vpack.c.b16 %v1303, %v1302
      %v1339 = vpack.c.b16 %v1305, %v1304
      %v1340 = vpack.c.b16 %v1307, %v1306
      %v1341 = vpack.c.b16 %v1309, %v1308
      %v1343 = vsel %vm944, %v1310, 0
      %v1346 = vsel %vm944, %v1311, 0
      %v1349 = vsel %vm944, %v1312, 0
      %v1352 = vsel %vm944, %v1313, 0
      %v1355 = vsel %vm944, %v1314, 0
      %v1358 = vsel %vm944, %v1315, 0
      %v1361 = vsel %vm944, %v1316, 0
      %v1364 = vsel %vm944, %v1317, 0
      %v1367 = vsel %vm944, %v1318, 0
      %v1370 = vsel %vm944, %v1319, 0
      %v1373 = vsel %vm944, %v1320, 0
      %v1376 = vsel %vm944, %v1321, 0
      %v1379 = vsel %vm944, %v1322, 0
      %v1382 = vsel %vm944, %v1323, 0
      %v1385 = vsel %vm944, %v1324, 0
      %v1388 = vsel %vm944, %v1325, 0
      %v1391 = vsel %vm944, %v1326, 0
      %v1394 = vsel %vm944, %v1327, 0
      %v1397 = vsel %vm944, %v1328, 0
      %v1400 = vsel %vm944, %v1329, 0
      %v1403 = vsel %vm944, %v1330, 0
      %v1406 = vsel %vm944, %v1331, 0
      %v1409 = vsel %vm944, %v1332, 0
      %v1412 = vsel %vm944, %v1333, 0
      %v1415 = vsel %vm944, %v1334, 0
      %v1418 = vsel %vm944, %v1335, 0
      %v1421 = vsel %vm944, %v1336, 0
      %v1424 = vsel %vm944, %v1337, 0
      %v1427 = vsel %vm944, %v1338, 0
      %v1430 = vsel %vm944, %v1339, 0
      %v1433 = vsel %vm944, %v1340, 0
      %v1436 = vsel %vm944, %v1341, 0
      %1438 = vmatprep.subr.bf16.mxu0 0
      %1439 = vmatpush1.bf16.msra.mxu0 0
      %1440 = vmatprep.subr.bf16.mxu0 0
      %1441 = vmatpush1.bf16.msra.mxu0 0
      %1442 = vmatprep.subr.bf16.mxu0 0
      %1443 = vmatpush1.bf16.msra.mxu0 0
      %1444 = vmatprep.subr.bf16.mxu0 0
      %1445 = vmatpush1.bf16.msra.mxu0 0
      %1446 = vmatprep.subr.bf16.mxu0 0
      %1447 = vmatpush1.bf16.msra.mxu0 %v1181
      %1448 = vmatprep.subr.bf16.mxu0 0
      %1449 = vmatpush1.bf16.msra.mxu0 %v1180
      %1450 = vmatprep.subr.bf16.mxu0 0
      %1451 = vmatpush1.bf16.msra.mxu0 %v1179
      %1452 = vmatprep.subr.bf16.mxu0 0
      %1453 = vmatpush1.bf16.msra.mxu0 %v1178
      %1454 = vmatprep.subr.bf16.mxu0 0
      %1455 = vmatpush2.bf16.msra.mxu0 0
      %1456 = vmatprep.subr.bf16.mxu0 0
      %1457 = vmatpush2.bf16.msra.mxu0 0
      %1458 = vmatprep.subr.bf16.mxu0 0
      %1459 = vmatpush2.bf16.msra.mxu0 0
      %1460 = vmatprep.subr.bf16.mxu0 0
      %1461 = vmatpush2.bf16.msra.mxu0 0
      %1462 = vmatprep.subr.bf16.mxu0 0
      %1463 = vmatpush2.bf16.msra.mxu0 0
      %1464 = vmatprep.subr.bf16.mxu0 0
      %1465 = vmatpush2.bf16.msra.mxu0 0
      %1466 = vmatprep.subr.bf16.mxu0 0
      %1467 = vmatpush2.bf16.msra.mxu0 0
      %1468 = vmatprep.subr.bf16.mxu0 0
      %1469 = vmatpush2.bf16.msra.mxu0 0
      %1470 = vmatprep.mubr.bf16.mxu0 0
      %1471 = vmatmul.mubr.bf16.gmra.mxu0 %v1343
      %v1472 = vpop.f32.mrf.mxu0
      %v1473 = vadd.f32 0.0, %v1472
      %v1474 = vpop.f32.mrf.mxu0
      %v1475 = vpop.f32.mrf.mxu0
      %v1476 = vadd.f32 0.0, %v1475
      %v1477 = vpop.f32.mrf.mxu0
      %1478 = vmatprep.mubr.bf16.mxu0 0
      %1479 = vmatmul.mubr.bf16.gmra.mxu0 %v1346
      %v1480 = vpop.f32.mrf.mxu0
      %v1481 = vadd.f32 0.0, %v1480
      %v1482 = vpop.f32.mrf.mxu0
      %v1483 = vpop.f32.mrf.mxu0
      %v1484 = vadd.f32 0.0, %v1483
      %v1485 = vpop.f32.mrf.mxu0
      %1486 = vmatprep.mubr.bf16.mxu0 0
      %1487 = vmatmul.mubr.bf16.gmra.mxu0 %v1349
      %v1488 = vpop.f32.mrf.mxu0
      %v1489 = vadd.f32 0.0, %v1488
      %v1490 = vpop.f32.mrf.mxu0
      %v1491 = vpop.f32.mrf.mxu0
      %v1492 = vadd.f32 0.0, %v1491
      %v1493 = vpop.f32.mrf.mxu0
      %1494 = vmatprep.mubr.bf16.mxu0 0
      %1495 = vmatmul.mubr.bf16.gmra.mxu0 %v1352
      %v1496 = vpop.f32.mrf.mxu0
      %v1497 = vadd.f32 0.0, %v1496
      %v1498 = vpop.f32.mrf.mxu0
      %v1499 = vpop.f32.mrf.mxu0
      %v1500 = vadd.f32 0.0, %v1499
      %v1501 = vpop.f32.mrf.mxu0
      %1502 = vmatprep.mubr.bf16.mxu0 0
      %1503 = vmatmul.mubr.bf16.gmra.mxu0 %v1355
      %v1504 = vpop.f32.mrf.mxu0
      %v1505 = vadd.f32 0.0, %v1504
      %v1506 = vpop.f32.mrf.mxu0
      %v1507 = vpop.f32.mrf.mxu0
      %v1508 = vadd.f32 0.0, %v1507
      %v1509 = vpop.f32.mrf.mxu0
      %1510 = vmatprep.mubr.bf16.mxu0 0
      %1511 = vmatmul.mubr.bf16.gmra.mxu0 %v1358
      %v1512 = vpop.f32.mrf.mxu0
      %v1513 = vadd.f32 0.0, %v1512
      %v1514 = vpop.f32.mrf.mxu0
      %v1515 = vpop.f32.mrf.mxu0
      %v1516 = vadd.f32 0.0, %v1515
      %v1517 = vpop.f32.mrf.mxu0
      %1518 = vmatprep.mubr.bf16.mxu0 0
      %1519 = vmatmul.mubr.bf16.gmra.mxu0 %v1361
      %v1520 = vpop.f32.mrf.mxu0
      %v1521 = vadd.f32 0.0, %v1520
      %v1522 = vpop.f32.mrf.mxu0
      %v1523 = vpop.f32.mrf.mxu0
      %v1524 = vadd.f32 0.0, %v1523
      %v1525 = vpop.f32.mrf.mxu0
      %1526 = vmatprep.mubr.bf16.mxu0 0
      %1527 = vmatmul.mubr.bf16.gmra.mxu0 %v1364
      %v1528 = vpop.f32.mrf.mxu0
      %v1529 = vadd.f32 0.0, %v1528
      %v1530 = vpop.f32.mrf.mxu0
      %v1531 = vpop.f32.mrf.mxu0
      %v1532 = vadd.f32 0.0, %v1531
      %v1533 = vpop.f32.mrf.mxu0
      %1534 = vmatprep.mubr.bf16.mxu0 0
      %1535 = vmatmul.mubr.bf16.gmra.mxu0 %v1367
      %v1536 = vpop.f32.mrf.mxu0
      %v1537 = vadd.f32 0.0, %v1536
      %v1538 = vpop.f32.mrf.mxu0
      %v1539 = vpop.f32.mrf.mxu0
      %v1540 = vadd.f32 0.0, %v1539
      %v1541 = vpop.f32.mrf.mxu0
      %1542 = vmatprep.mubr.bf16.mxu0 0
      %1543 = vmatmul.mubr.bf16.gmra.mxu0 %v1370
      %v1544 = vpop.f32.mrf.mxu0
      %v1545 = vadd.f32 0.0, %v1544
      %v1546 = vpop.f32.mrf.mxu0
      %v1547 = vpop.f32.mrf.mxu0
      %v1548 = vadd.f32 0.0, %v1547
      %v1549 = vpop.f32.mrf.mxu0
      %1550 = vmatprep.mubr.bf16.mxu0 0
      %1551 = vmatmul.mubr.bf16.gmra.mxu0 %v1373
      %v1552 = vpop.f32.mrf.mxu0
      %v1553 = vadd.f32 0.0, %v1552
      %v1554 = vpop.f32.mrf.mxu0
      %v1555 = vpop.f32.mrf.mxu0
      %v1556 = vadd.f32 0.0, %v1555
      %v1557 = vpop.f32.mrf.mxu0
      %1558 = vmatprep.mubr.bf16.mxu0 0
      %1559 = vmatmul.mubr.bf16.gmra.mxu0 %v1376
      %v1560 = vpop.f32.mrf.mxu0
      %v1561 = vadd.f32 0.0, %v1560
      %v1562 = vpop.f32.mrf.mxu0
      %v1563 = vpop.f32.mrf.mxu0
      %v1564 = vadd.f32 0.0, %v1563
      %v1565 = vpop.f32.mrf.mxu0
      %1566 = vmatprep.mubr.bf16.mxu0 0
      %1567 = vmatmul.mubr.bf16.gmra.mxu0 %v1379
      %v1568 = vpop.f32.mrf.mxu0
      %v1569 = vadd.f32 0.0, %v1568
      %v1570 = vpop.f32.mrf.mxu0
      %v1571 = vpop.f32.mrf.mxu0
      %v1572 = vadd.f32 0.0, %v1571
      %v1573 = vpop.f32.mrf.mxu0
      %1574 = vmatprep.mubr.bf16.mxu0 0
      %1575 = vmatmul.mubr.bf16.gmra.mxu0 %v1382
      %v1576 = vpop.f32.mrf.mxu0
      %v1577 = vadd.f32 0.0, %v1576
      %v1578 = vpop.f32.mrf.mxu0
      %v1579 = vpop.f32.mrf.mxu0
      %v1580 = vadd.f32 0.0, %v1579
      %v1581 = vpop.f32.mrf.mxu0
      %1582 = vmatprep.mubr.bf16.mxu0 0
      %1583 = vmatmul.mubr.bf16.gmra.mxu0 %v1385
      %v1584 = vpop.f32.mrf.mxu0
      %v1585 = vadd.f32 0.0, %v1584
      %v1586 = vpop.f32.mrf.mxu0
      %v1587 = vpop.f32.mrf.mxu0
      %v1588 = vadd.f32 0.0, %v1587
      %v1589 = vpop.f32.mrf.mxu0
      %1590 = vmatprep.mubr.bf16.mxu0 0
      %1591 = vmatmul.mubr.bf16.gmra.mxu0 %v1388
      %v1592 = vpop.f32.mrf.mxu0
      %v1593 = vadd.f32 0.0, %v1592
      %v1594 = vpop.f32.mrf.mxu0
      %v1595 = vpop.f32.mrf.mxu0
      %v1596 = vadd.f32 0.0, %v1595
      %v1597 = vpop.f32.mrf.mxu0
      %1598 = vmatprep.mubr.bf16.mxu0 0
      %1599 = vmatmul.mubr.bf16.gmra.mxu0 %v1391
      %v1600 = vpop.f32.mrf.mxu0
      %v1601 = vadd.f32 0.0, %v1600
      %v1602 = vpop.f32.mrf.mxu0
      %v1603 = vpop.f32.mrf.mxu0
      %v1604 = vadd.f32 0.0, %v1603
      %v1605 = vpop.f32.mrf.mxu0
      %1606 = vmatprep.mubr.bf16.mxu0 0
      %1607 = vmatmul.mubr.bf16.gmra.mxu0 %v1394
      %v1608 = vpop.f32.mrf.mxu0
      %v1609 = vadd.f32 0.0, %v1608
      %v1610 = vpop.f32.mrf.mxu0
      %v1611 = vpop.f32.mrf.mxu0
      %v1612 = vadd.f32 0.0, %v1611
      %v1613 = vpop.f32.mrf.mxu0
      %1614 = vmatprep.mubr.bf16.mxu0 0
      %1615 = vmatmul.mubr.bf16.gmra.mxu0 %v1397
      %v1616 = vpop.f32.mrf.mxu0
      %v1617 = vadd.f32 0.0, %v1616
      %v1618 = vpop.f32.mrf.mxu0
      %v1619 = vpop.f32.mrf.mxu0
      %v1620 = vadd.f32 0.0, %v1619
      %v1621 = vpop.f32.mrf.mxu0
      %1622 = vmatprep.mubr.bf16.mxu0 0
      %1623 = vmatmul.mubr.bf16.gmra.mxu0 %v1400
      %v1624 = vpop.f32.mrf.mxu0
      %v1625 = vadd.f32 0.0, %v1624
      %v1626 = vpop.f32.mrf.mxu0
      %v1627 = vpop.f32.mrf.mxu0
      %v1628 = vadd.f32 0.0, %v1627
      %v1629 = vpop.f32.mrf.mxu0
      %1630 = vmatprep.mubr.bf16.mxu0 0
      %1631 = vmatmul.mubr.bf16.gmra.mxu0 %v1403
      %v1632 = vpop.f32.mrf.mxu0
      %v1633 = vadd.f32 0.0, %v1632
      %v1634 = vpop.f32.mrf.mxu0
      %v1635 = vpop.f32.mrf.mxu0
      %v1636 = vadd.f32 0.0, %v1635
      %v1637 = vpop.f32.mrf.mxu0
      %1638 = vmatprep.mubr.bf16.mxu0 0
      %1639 = vmatmul.mubr.bf16.gmra.mxu0 %v1406
      %v1640 = vpop.f32.mrf.mxu0
      %v1641 = vadd.f32 0.0, %v1640
      %v1642 = vpop.f32.mrf.mxu0
      %v1643 = vpop.f32.mrf.mxu0
      %v1644 = vadd.f32 0.0, %v1643
      %v1645 = vpop.f32.mrf.mxu0
      %1646 = vmatprep.mubr.bf16.mxu0 0
      %1647 = vmatmul.mubr.bf16.gmra.mxu0 %v1409
      %v1648 = vpop.f32.mrf.mxu0
      %v1649 = vadd.f32 0.0, %v1648
      %v1650 = vpop.f32.mrf.mxu0
      %v1651 = vpop.f32.mrf.mxu0
      %v1652 = vadd.f32 0.0, %v1651
      %v1653 = vpop.f32.mrf.mxu0
      %1654 = vmatprep.mubr.bf16.mxu0 0
      %1655 = vmatmul.mubr.bf16.gmra.mxu0 %v1412
      %v1656 = vpop.f32.mrf.mxu0
      %v1657 = vadd.f32 0.0, %v1656
      %v1658 = vpop.f32.mrf.mxu0
      %v1659 = vpop.f32.mrf.mxu0
      %v1660 = vadd.f32 0.0, %v1659
      %v1661 = vpop.f32.mrf.mxu0
      %1662 = vmatprep.mubr.bf16.mxu0 0
      %1663 = vmatmul.mubr.bf16.gmra.mxu0 %v1415
      %v1664 = vpop.f32.mrf.mxu0
      %v1665 = vadd.f32 0.0, %v1664
      %v1666 = vpop.f32.mrf.mxu0
      %v1667 = vpop.f32.mrf.mxu0
      %v1668 = vadd.f32 0.0, %v1667
      %v1669 = vpop.f32.mrf.mxu0
      %1670 = vmatprep.mubr.bf16.mxu0 0
      %1671 = vmatmul.mubr.bf16.gmra.mxu0 %v1418
      %v1672 = vpop.f32.mrf.mxu0
      %v1673 = vadd.f32 0.0, %v1672
      %v1674 = vpop.f32.mrf.mxu0
      %v1675 = vpop.f32.mrf.mxu0
      %v1676 = vadd.f32 0.0, %v1675
      %v1677 = vpop.f32.mrf.mxu0
      %1678 = vmatprep.mubr.bf16.mxu0 0
      %1679 = vmatmul.mubr.bf16.gmra.mxu0 %v1421
      %v1680 = vpop.f32.mrf.mxu0
      %v1681 = vadd.f32 0.0, %v1680
      %v1682 = vpop.f32.mrf.mxu0
      %v1683 = vpop.f32.mrf.mxu0
      %v1684 = vadd.f32 0.0, %v1683
      %v1685 = vpop.f32.mrf.mxu0
      %1686 = vmatprep.mubr.bf16.mxu0 0
      %1687 = vmatmul.mubr.bf16.gmra.mxu0 %v1424
      %v1688 = vpop.f32.mrf.mxu0
      %v1689 = vadd.f32 0.0, %v1688
      %v1690 = vpop.f32.mrf.mxu0
      %v1691 = vpop.f32.mrf.mxu0
      %v1692 = vadd.f32 0.0, %v1691
      %v1693 = vpop.f32.mrf.mxu0
      %1694 = vmatprep.mubr.bf16.mxu0 0
      %1695 = vmatmul.mubr.bf16.gmra.mxu0 %v1427
      %v1696 = vpop.f32.mrf.mxu0
      %v1697 = vadd.f32 0.0, %v1696
      %v1698 = vpop.f32.mrf.mxu0
      %v1699 = vpop.f32.mrf.mxu0
      %v1700 = vadd.f32 0.0, %v1699
      %v1701 = vpop.f32.mrf.mxu0
      %1702 = vmatprep.mubr.bf16.mxu0 0
      %1703 = vmatmul.mubr.bf16.gmra.mxu0 %v1430
      %v1704 = vpop.f32.mrf.mxu0
      %v1705 = vadd.f32 0.0, %v1704
      %v1706 = vpop.f32.mrf.mxu0
      %v1707 = vpop.f32.mrf.mxu0
      %v1708 = vadd.f32 0.0, %v1707
      %v1709 = vpop.f32.mrf.mxu0
      %1710 = vmatprep.mubr.bf16.mxu0 0
      %1711 = vmatmul.mubr.bf16.gmra.mxu0 %v1433
      %v1712 = vpop.f32.mrf.mxu0
      %v1713 = vadd.f32 0.0, %v1712
      %v1714 = vpop.f32.mrf.mxu0
      %v1715 = vpop.f32.mrf.mxu0
      %v1716 = vadd.f32 0.0, %v1715
      %v1717 = vpop.f32.mrf.mxu0
      %1718 = vmatprep.mubr.bf16.mxu0 0
      %1719 = vmatmul.mubr.bf16.gmra.mxu0 %v1436
      %v1720 = vpop.f32.mrf.mxu0
      %v1721 = vadd.f32 0.0, %v1720
      %v1722 = vpop.f32.mrf.mxu0
      %v1723 = vpop.f32.mrf.mxu0
      %v1724 = vadd.f32 0.0, %v1723
      %v1725 = vpop.f32.mrf.mxu0
      %1726 = vdwg.mxu0
      %s1727 = sld [smem:[#allocation2]]
      %v1728 = vstv %s1727
      %v1729 = vmul.f32 %v1728, %v1473
      %v1730 = vmul.f32 %v1728, %v1476
      %v1731 = vmul.f32 %v1728, %v1481
      %v1732 = vmul.f32 %v1728, %v1484
      %v1733 = vmul.f32 %v1728, %v1489
      %v1734 = vmul.f32 %v1728, %v1492
      %v1735 = vmul.f32 %v1728, %v1497
      %v1736 = vmul.f32 %v1728, %v1500
      %v1737 = vmul.f32 %v1728, %v1505
      %v1738 = vmul.f32 %v1728, %v1508
      %v1739 = vmul.f32 %v1728, %v1513
      %v1740 = vmul.f32 %v1728, %v1516
      %v1741 = vmul.f32 %v1728, %v1521
      %v1742 = vmul.f32 %v1728, %v1524
      %v1743 = vmul.f32 %v1728, %v1529
      %v1744 = vmul.f32 %v1728, %v1532
      %v1745 = vmul.f32 %v1728, %v1537
      %v1746 = vmul.f32 %v1728, %v1540
      %v1747 = vmul.f32 %v1728, %v1545
      %v1748 = vmul.f32 %v1728, %v1548
      %v1749 = vmul.f32 %v1728, %v1553
      %v1750 = vmul.f32 %v1728, %v1556
      %v1751 = vmul.f32 %v1728, %v1561
      %v1752 = vmul.f32 %v1728, %v1564
      %v1753 = vmul.f32 %v1728, %v1569
      %v1754 = vmul.f32 %v1728, %v1572
      %v1755 = vmul.f32 %v1728, %v1577
      %v1756 = vmul.f32 %v1728, %v1580
      %v1757 = vmul.f32 %v1728, %v1585
      %v1758 = vmul.f32 %v1728, %v1588
      %v1759 = vmul.f32 %v1728, %v1593
      %v1760 = vmul.f32 %v1728, %v1596
      %v1761 = vmul.f32 %v1728, %v1601
      %v1762 = vmul.f32 %v1728, %v1604
      %v1763 = vmul.f32 %v1728, %v1609
      %v1764 = vmul.f32 %v1728, %v1612
      %v1765 = vmul.f32 %v1728, %v1617
      %v1766 = vmul.f32 %v1728, %v1620
      %v1767 = vmul.f32 %v1728, %v1625
      %v1768 = vmul.f32 %v1728, %v1628
      %v1769 = vmul.f32 %v1728, %v1633
      %v1770 = vmul.f32 %v1728, %v1636
      %v1771 = vmul.f32 %v1728, %v1641
      %v1772 = vmul.f32 %v1728, %v1644
      %v1773 = vmul.f32 %v1728, %v1649
      %v1774 = vmul.f32 %v1728, %v1652
      %v1775 = vmul.f32 %v1728, %v1657
      %v1776 = vmul.f32 %v1728, %v1660
      %v1777 = vmul.f32 %v1728, %v1665
      %v1778 = vmul.f32 %v1728, %v1668
      %v1779 = vmul.f32 %v1728, %v1673
      %v1780 = vmul.f32 %v1728, %v1676
      %v1781 = vmul.f32 %v1728, %v1681
      %v1782 = vmul.f32 %v1728, %v1684
      %v1783 = vmul.f32 %v1728, %v1689
      %v1784 = vmul.f32 %v1728, %v1692
      %v1785 = vmul.f32 %v1728, %v1697
      %v1786 = vmul.f32 %v1728, %v1700
      %v1787 = vmul.f32 %v1728, %v1705
      %v1788 = vmul.f32 %v1728, %v1708
      %v1789 = vmul.f32 %v1728, %v1713
      %v1790 = vmul.f32 %v1728, %v1716
      %v1791 = vmul.f32 %v1728, %v1721
      %v1792 = vmul.f32 %v1728, %v1724
      %v1793 = vadd.f32 %v1729, %v200
      %v1794 = vadd.f32 %v1730, %v201
      %v1795 = vadd.f32 %v1731, %v202
      %v1796 = vadd.f32 %v1732, %v203
      %v1797 = vadd.f32 %v1733, %v204
      %v1798 = vadd.f32 %v1734, %v205
      %v1799 = vadd.f32 %v1735, %v206
      %v1800 = vadd.f32 %v1736, %v207
      %v1801 = vadd.f32 %v1737, %v208
      %v1802 = vadd.f32 %v1738, %v209
      %v1803 = vadd.f32 %v1739, %v210
      %v1804 = vadd.f32 %v1740, %v211
      %v1805 = vadd.f32 %v1741, %v212
      %v1806 = vadd.f32 %v1742, %v213
      %v1807 = vadd.f32 %v1743, %v214
      %v1808 = vadd.f32 %v1744, %v215
      %v1809 = vadd.f32 %v1745, %v216
      %v1810 = vadd.f32 %v1746, %v217
      %v1811 = vadd.f32 %v1747, %v218
      %v1812 = vadd.f32 %v1748, %v219
      %v1813 = vadd.f32 %v1749, %v220
      %v1814 = vadd.f32 %v1750, %v221
      %v1815 = vadd.f32 %v1751, %v222
      %v1816 = vadd.f32 %v1752, %v223
      %v1817 = vadd.f32 %v1753, %v224
      %v1818 = vadd.f32 %v1754, %v225
      %v1819 = vadd.f32 %v1755, %v226
      %v1820 = vadd.f32 %v1756, %v227
      %v1821 = vadd.f32 %v1757, %v228
      %v1822 = vadd.f32 %v1758, %v229
      %v1823 = vadd.f32 %v1759, %v230
      %v1824 = vadd.f32 %v1760, %v231
      %v1825 = vadd.f32 %v1761, %v232
      %v1826 = vadd.f32 %v1762, %v233
      %v1827 = vadd.f32 %v1763, %v234
      %v1828 = vadd.f32 %v1764, %v235
      %v1829 = vadd.f32 %v1765, %v236
      %v1830 = vadd.f32 %v1766, %v237
      %v1831 = vadd.f32 %v1767, %v238
      %v1832 = vadd.f32 %v1768, %v239
      %v1833 = vadd.f32 %v1769, %v240
      %v1834 = vadd.f32 %v1770, %v241
      %v1835 = vadd.f32 %v1771, %v242
      %v1836 = vadd.f32 %v1772, %v243
      %v1837 = vadd.f32 %v1773, %v244
      %v1838 = vadd.f32 %v1774, %v245
      %v1839 = vadd.f32 %v1775, %v246
      %v1840 = vadd.f32 %v1776, %v247
      %v1841 = vadd.f32 %v1777, %v248
      %v1842 = vadd.f32 %v1778, %v249
      %v1843 = vadd.f32 %v1779, %v250
      %v1844 = vadd.f32 %v1780, %v251
      %v1845 = vadd.f32 %v1781, %v252
      %v1846 = vadd.f32 %v1782, %v253
      %v1847 = vadd.f32 %v1783, %v254
      %v1848 = vadd.f32 %v1784, %v255
      %v1849 = vadd.f32 %v1785, %v256
      %v1850 = vadd.f32 %v1786, %v257
      %v1851 = vadd.f32 %v1787, %v258
      %v1852 = vadd.f32 %v1788, %v259
      %v1853 = vadd.f32 %v1789, %v260
      %v1854 = vadd.f32 %v1790, %v261
      %v1855 = vadd.f32 %v1791, %v262
      %v1856 = vadd.f32 %v1792, %v263
      %1857 = vst.msk [vmem:[%s198] sm:$0xff] %vm854, %v1793
      %1858 = vst.msk [vmem:[%s198 + $0x8] sm:$0xff] %vm854, %v1794
      %1859 = vst.msk [vmem:[%s198 + $0x10] sm:$0xff] %vm854, %v1795
      %1860 = vst.msk [vmem:[%s198 + $0x18] sm:$0xff] %vm854, %v1796
      %1861 = vst.msk [vmem:[%s198 + $0x20] sm:$0xff] %vm854, %v1797
      %1862 = vst.msk [vmem:[%s198 + $0x28] sm:$0xff] %vm854, %v1798
      %1863 = vst.msk [vmem:[%s198 + $0x30] sm:$0xff] %vm854, %v1799
      %1864 = vst.msk [vmem:[%s198 + $0x38] sm:$0xff] %vm854, %v1800
      %1865 = vst.msk [vmem:[%s198 + $0x40] sm:$0xff] %vm854, %v1801
      %1866 = vst.msk [vmem:[%s198 + $0x48] sm:$0xff] %vm854, %v1802
      %1867 = vst.msk [vmem:[%s198 + $0x50] sm:$0xff] %vm854, %v1803
      %1868 = vst.msk [vmem:[%s198 + $0x58] sm:$0xff] %vm854, %v1804
      %1869 = vst.msk [vmem:[%s198 + $0x60] sm:$0xff] %vm854, %v1805
      %1870 = vst.msk [vmem:[%s198 + $0x68] sm:$0xff] %vm854, %v1806
      %1871 = vst.msk [vmem:[%s198 + $0x70] sm:$0xff] %vm854, %v1807
      %1872 = vst.msk [vmem:[%s198 + $0x78] sm:$0xff] %vm854, %v1808
      %1873 = vst.msk [vmem:[%s198 + $0x80] sm:$0xff] %vm854, %v1809
      %1874 = vst.msk [vmem:[%s198 + $0x88] sm:$0xff] %vm854, %v1810
      %1875 = vst.msk [vmem:[%s198 + $0x90] sm:$0xff] %vm854, %v1811
      %1876 = vst.msk [vmem:[%s198 + $0x98] sm:$0xff] %vm854, %v1812
      %1877 = vst.msk [vmem:[%s198 + $0xa0] sm:$0xff] %vm854, %v1813
      %1878 = vst.msk [vmem:[%s198 + $0xa8] sm:$0xff] %vm854, %v1814
      %1879 = vst.msk [vmem:[%s198 + $0xb0] sm:$0xff] %vm854, %v1815
      %1880 = vst.msk [vmem:[%s198 + $0xb8] sm:$0xff] %vm854, %v1816
      %1881 = vst.msk [vmem:[%s198 + $0xc0] sm:$0xff] %vm854, %v1817
      %1882 = vst.msk [vmem:[%s198 + $0xc8] sm:$0xff] %vm854, %v1818
      %1883 = vst.msk [vmem:[%s198 + $0xd0] sm:$0xff] %vm854, %v1819
      %1884 = vst.msk [vmem:[%s198 + $0xd8] sm:$0xff] %vm854, %v1820
      %1885 = vst.msk [vmem:[%s198 + $0xe0] sm:$0xff] %vm854, %v1821
      %1886 = vst.msk [vmem:[%s198 + $0xe8] sm:$0xff] %vm854, %v1822
      %1887 = vst.msk [vmem:[%s198 + $0xf0] sm:$0xff] %vm854, %v1823
      %1888 = vst.msk [vmem:[%s198 + $0xf8] sm:$0xff] %vm854, %v1824
      %1889 = vst.msk [vmem:[%s198 + $0x100] sm:$0xff] %vm854, %v1825
      %1890 = vst.msk [vmem:[%s198 + $0x108] sm:$0xff] %vm854, %v1826
      %1891 = vst.msk [vmem:[%s198 + $0x110] sm:$0xff] %vm854, %v1827
      %1892 = vst.msk [vmem:[%s198 + $0x118] sm:$0xff] %vm854, %v1828
      %1893 = vst.msk [vmem:[%s198 + $0x120] sm:$0xff] %vm854, %v1829
      %1894 = vst.msk [vmem:[%s198 + $0x128] sm:$0xff] %vm854, %v1830
      %1895 = vst.msk [vmem:[%s198 + $0x130] sm:$0xff] %vm854, %v1831
      %1896 = vst.msk [vmem:[%s198 + $0x138] sm:$0xff] %vm854, %v1832
      %1897 = vst.msk [vmem:[%s198 + $0x140] sm:$0xff] %vm854, %v1833
      %1898 = vst.msk [vmem:[%s198 + $0x148] sm:$0xff] %vm854, %v1834
      %1899 = vst.msk [vmem:[%s198 + $0x150] sm:$0xff] %vm854, %v1835
      %1900 = vst.msk [vmem:[%s198 + $0x158] sm:$0xff] %vm854, %v1836
      %1901 = vst.msk [vmem:[%s198 + $0x160] sm:$0xff] %vm854, %v1837
      %1902 = vst.msk [vmem:[%s198 + $0x168] sm:$0xff] %vm854, %v1838
      %1903 = vst.msk [vmem:[%s198 + $0x170] sm:$0xff] %vm854, %v1839
      %1904 = vst.msk [vmem:[%s198 + $0x178] sm:$0xff] %vm854, %v1840
      %1905 = vst.msk [vmem:[%s198 + $0x180] sm:$0xff] %vm854, %v1841
      %1906 = vst.msk [vmem:[%s198 + $0x188] sm:$0xff] %vm854, %v1842
      %1907 = vst.msk [vmem:[%s198 + $0x190] sm:$0xff] %vm854, %v1843
      %1908 = vst.msk [vmem:[%s198 + $0x198] sm:$0xff] %vm854, %v1844
      %1909 = vst.msk [vmem:[%s198 + $0x1a0] sm:$0xff] %vm854, %v1845
      %1910 = vst.msk [vmem:[%s198 + $0x1a8] sm:$0xff] %vm854, %v1846
      %1911 = vst.msk [vmem:[%s198 + $0x1b0] sm:$0xff] %vm854, %v1847
      %1912 = vst.msk [vmem:[%s198 + $0x1b8] sm:$0xff] %vm854, %v1848
      %1913 = vst.msk [vmem:[%s198 + $0x1c0] sm:$0xff] %vm854, %v1849
      %1914 = vst.msk [vmem:[%s198 + $0x1c8] sm:$0xff] %vm854, %v1850
      %1915 = vst.msk [vmem:[%s198 + $0x1d0] sm:$0xff] %vm854, %v1851
      %1916 = vst.msk [vmem:[%s198 + $0x1d8] sm:$0xff] %vm854, %v1852
      %1917 = vst.msk [vmem:[%s198 + $0x1e0] sm:$0xff] %vm854, %v1853
      %1918 = vst.msk [vmem:[%s198 + $0x1e8] sm:$0xff] %vm854, %v1854
      %1919 = vst.msk [vmem:[%s198 + $0x1f0] sm:$0xff] %vm854, %v1855
      %1920 = vst.msk [vmem:[%s198 + $0x1f8] sm:$0xff] %vm854, %v1856
      %p1921 = scmp.lt.s32.totalorder %s16, 1
      %s1922 = scalar_select %p1921, %s16, 1
      %s1923 = smul.addr %s1922, 64
      %s1924 = smul.addr %s1923, 8
      %s1925 = scalar_lea.vmem %s4, %s1924
      // Predicated region
      $region37: #{tpu_custom_call.1} parent=35 // pred_check
        %p1926 = pneg %p123
      $region38: #{tpu_custom_call.1} parent=35 // pred_check_branch
        %1928 = sbr.rel (%p1926) target = $region40
      $region39: #{tpu_custom_call.1} parent=35 // pred_region
        _
      $region40: #{tpu_custom_call.1} parent=35 // pred_fallthru
        _
    $region36: #{tpu_custom_call.1} parent=5 // pred_fallthru
      _
    %p1929 = scmp.le.s32.totalorder 2, %s11
    // Predicated region
    $region41: #{tpu_custom_call.1} parent=5 // pred_check
      %p1930 = pneg %p1929
    $region42: #{tpu_custom_call.1} parent=5 // pred_check_branch
      %1932 = sbr.rel (%p1930) target = $region44
    $region43: #{tpu_custom_call.1} parent=5 // pred_region
      %s1933 = ssub.s32 %s11, 2
      // Predicated region
      $region45: #{tpu_custom_call.1} parent=43 // pred_check
        %p1934 = pneg %p129
      $region46: #{tpu_custom_call.1} parent=43 // pred_check_branch
        %1936 = sbr.rel (%p1934) target = $region48
      $region47: #{tpu_custom_call.1} parent=43 // pred_region
        %p1937 = scmp.lt.s32.totalorder %s17, 1
        %s1938 = scalar_select %p1937, %s17, 1
        %s1939 = smul.addr %s1938, 64
        %s1940 = smul.addr %s1939, 8
        %s1941 = scalar_lea.vmem %s4, %s1940
      $region48: #{tpu_custom_call.1} parent=43 // pred_fallthru
        _
    $region44: #{tpu_custom_call.1} parent=5 // pred_fallthru
      _
  $region6: #{tpu_custom_call.1} parent=0 // loop_footer
    %s15 = sadd.s32 1, %s11
  $region7: #{tpu_custom_call.1} parent=0 // loop_footer_branch
    %10 = sbr.rel target = $region3
  $region8: #{tpu_custom_call.1} parent=0 // loop_exit
    _

</llo_original>
